<compile_context>
chip_gen: v5e
topology: v5e:2x2
jax: 0.10.0
libtpu: 0.0.40
codegen_flags: <defaults>
</compile_context>

<pallas_src>
import math
import functools

import jax
import jax.numpy as jnp
from jax import lax
from jax.experimental import pallas as pl
from jax.experimental.pallas import tpu as pltpu

# ---- small config (CONFIG.D_MODEL etc.) -------------------------------------
D_MODEL = 32
H = D_MODEL // 2      # 16
E = D_MODEL // 8      # 4
SEQ = 80              # 16 metadata tokens + 64 squares
N_SQ = 64
N_HEADS = 3           # game_result, move_time, game_length

# ---- packed-weight layouts ---------------------------------------------------
# projection pack: (40, 8) -- rows 0:32 weights, row 32 bias, rest zero pad
#   columns: [from, to, pool_result, pool_time, pool_length, 0, 0, 0]
_PROJ_ROWS = 40
_PROJ_COLS = 8
# trunk pack: (3, 176, 16), per head:
_R_W1 = 0          # rows   0:32   Linear(32,16)
_R_RB = 32         # rows  32:128  6 x Linear(16,16)  (3 residual blocks)
_R_W2 = 128        # rows 128:144  Linear(16,4) padded to 16 cols
_R_W3 = 144        # rows 144:160  Linear(4,1)  padded to (16,16)
_R_BIAS = 160      # rows 160:176  [b1, rb0a, rb0b, rb1a, rb1b, rb2a, rb2b, b2, b3, pad...]
_TRUNK_ROWS = 176


# ---- deterministic parameter init (shapes from the module __init__) ---------
def _xavier(key, shape):
    fan_in, fan_out = shape[-2], shape[-1]
    limit = math.sqrt(6.0 / (fan_in + fan_out))
    return jax.random.uniform(key, shape, jnp.float32, -limit, limit)


def init_params(key):
    keys = iter(jax.random.split(key, 64))
    p = {}
    p["ft_w"] = jnp.stack([_xavier(next(keys), (D_MODEL, 1)) for _ in range(2)])
    p["ft_b"] = jnp.zeros((2, 1, 1), jnp.float32)
    p["pool_w"] = jnp.stack([_xavier(next(keys), (D_MODEL, 1)) for _ in range(3)])
    p["pool_b"] = jnp.zeros((3, 1, 1), jnp.float32)
    p["l1_w"] = jnp.stack([_xavier(next(keys), (D_MODEL, H)) for _ in range(3)])
    p["l1_b"] = jnp.zeros((3, 1, H), jnp.float32)
    p["rb_w"] = jnp.stack([_xavier(next(keys), (H, H)) for _ in range(18)])
    p["rb_b"] = jnp.zeros((18, 1, H), jnp.float32)
    p["l2_w"] = jnp.stack([_xavier(next(keys), (H, E)) for _ in range(3)])
    p["l2_b"] = jnp.zeros((3, 1, E), jnp.float32)
    p["l3_w"] = jnp.stack([_xavier(next(keys), (E, 1)) for _ in range(3)])
    p["l3_b"] = jnp.zeros((3, 1, 1), jnp.float32)
    return p


def pack_params(p):
    """Pack the 12 logical parameter arrays into 2 kernel inputs."""
    projW = jnp.zeros((_PROJ_ROWS, _PROJ_COLS), jnp.float32)
    projW = projW.at[0:D_MODEL, 0].set(p["ft_w"][0][:, 0])
    projW = projW.at[0:D_MODEL, 1].set(p["ft_w"][1][:, 0])
    projW = projW.at[D_MODEL, 0].set(p["ft_b"][0, 0, 0])
    projW = projW.at[D_MODEL, 1].set(p["ft_b"][1, 0, 0])
    for h in range(N_HEADS):
        projW = projW.at[0:D_MODEL, 2 + h].set(p["pool_w"][h][:, 0])
        projW = projW.at[D_MODEL, 2 + h].set(p["pool_b"][h, 0, 0])

    trunk = jnp.zeros((N_HEADS, _TRUNK_ROWS, H), jnp.float32)
    trunk = trunk.at[:, _R_W1:_R_W1 + D_MODEL, :].set(p["l1_w"])
    for j in range(6):
        wj = jnp.stack([p["rb_w"][h * 6 + j] for h in range(N_HEADS)])   # (3,16,16)
        trunk = trunk.at[:, _R_RB + 16 * j:_R_RB + 16 * (j + 1), :].set(wj)
    trunk = trunk.at[:, _R_W2:_R_W2 + H, 0:E].set(p["l2_w"])
    trunk = trunk.at[:, _R_W3:_R_W3 + E, 0:1].set(p["l3_w"])
    # biases
    trunk = trunk.at[:, _R_BIAS + 0, :].set(p["l1_b"][:, 0, :])
    for j in range(6):
        bj = jnp.stack([p["rb_b"][h * 6 + j, 0] for h in range(N_HEADS)])  # (3,16)
        trunk = trunk.at[:, _R_BIAS + 1 + j, :].set(bj)
    trunk = trunk.at[:, _R_BIAS + 7, 0:E].set(p["l2_b"][:, 0, :])
    trunk = trunk.at[:, _R_BIAS + 8, 0:1].set(p["l3_b"][:, 0, :])
    return projW, trunk


# ---- small layout helper -----------------------------------------------------
def _permute(x, perm):
    """Lane-layout-aware permutation (einshape if available)."""
    es = getattr(pltpu, "einshape", None)
    if es is not None:
        names = "abcdefgh"
        src = names[:x.ndim]
        dst = "".join(src[p] for p in perm)
        return es(src + "->" + dst, x)
    return jnp.transpose(x, perm)


# ---- Pallas kernel: all prediction heads for TB batch rows at once -----------
def heads_kernel(boards_ref, proj_ref, trunk_ref, sq_ref, heads_ref):
    tb = boards_ref.shape[0]

    # --- fused column projections: from, to, 3x attention-pool logits -------
    xf = boards_ref[...].reshape(tb * SEQ, D_MODEL)                    # (tb*80, 32)
    wp = proj_ref[0:D_MODEL, :]                                        # (32, 8)
    bp = proj_ref[D_MODEL:D_MODEL + 1, :]                              # (1, 8)
    proj = jnp.dot(xf, wp, preferred_element_type=jnp.float32) + bp    # (tb*80, 8)
    proj = proj.reshape(tb, SEQ, _PROJ_COLS)                           # (tb, 80, 8)
    projT = _permute(proj, (0, 2, 1))                                  # (tb, 8, 80)

    # from/to square logits, lane-dense (squares on the lane axis)
    sq_ref[...] = projT[:, 0:2, 16:]                                   # (tb, 2, 64)

    # --- attention pooling: softmax over the 80 tokens (minor axis) ---------
    logits = projT[:, 2:2 + N_HEADS, :]                                # (tb, 3, 80)
    m = jnp.max(logits, axis=-1, keepdims=True)
    e = jnp.exp(logits - m)
    s = jnp.sum(e, axis=-1, keepdims=True)
    w = e * pl.reciprocal(s, approx=True)                              # (tb, 3, 80)

    # context vectors per head, then put the head axis in front (batch dim)
    ctx = jnp.einsum("bhs,bsd->bhd", w, boards_ref[...],
                     preferred_element_type=jnp.float32)               # (tb, 3, 32)
    ctx = _permute(ctx, (1, 0, 2))                                     # (3, tb, 32)

    # --- three deep heads as head-batched matmuls (M = tb) ------------------
    bias = trunk_ref[:, _R_BIAS:_R_BIAS + 16, :]                       # (3, 16, 16)

    def bdot(x3, w3):
        return jnp.einsum("hbk,hkm->hbm", x3, w3,
                          preferred_element_type=jnp.float32)

    w1 = trunk_ref[:, _R_W1:_R_W1 + D_MODEL, :]                        # (3, 32, 16)
    y = jnp.maximum(bdot(ctx, w1) + bias[:, 0:1, :], 0.0)              # (3, tb, 16)
    for r in range(3):                                                 # residual blocks
        wa = trunk_ref[:, _R_RB + 32 * r:_R_RB + 32 * r + 16, :]
        wb = trunk_ref[:, _R_RB + 32 * r + 16:_R_RB + 32 * r + 32, :]
        z = jnp.maximum(bdot(y, wa) + bias[:, 1 + 2 * r:2 + 2 * r, :], 0.0)
        z = jnp.maximum(bdot(z, wb) + bias[:, 2 + 2 * r:3 + 2 * r, :], 0.0)
        y = y + z
    w2 = trunk_ref[:, _R_W2:_R_W2 + H, :]                              # (3, 16, 16)
    y = jnp.maximum(bdot(y, w2) + bias[:, 7:8, :], 0.0)                # (3, tb, 16)
    w3 = trunk_ref[:, _R_W3:_R_W3 + H, :]                              # (3, 16, 16)
    o = (bdot(y, w3) + bias[:, 8:9, :])[:, :, 0:1]                     # (3, tb, 1)

    # per-head output activations: tanh / sigmoid*100 / identity
    o_gr = jnp.tanh(o[0:1])
    o_mt = 100.0 / (1.0 + jnp.exp(-o[1:2]))
    o_ml = o[2:3]
    heads_ref[...] = jnp.concatenate([o_gr, o_mt, o_ml], axis=0)       # (3, tb, 1)


# ---- wrapper -----------------------------------------------------------------
def _round_up(x, m):
    return ((x + m - 1) // m) * m


@functools.partial(jax.jit, static_argnames=("tb",))
def chess_heads_forward(boards, projW, trunk, tb=64):
    B, S, D = boards.shape
    assert S == SEQ and D == D_MODEL
    TB = min(tb, _round_up(B, 8))
    Bp = _round_up(B, TB)
    if Bp != B:
        boards = jnp.pad(boards, ((0, Bp - B), (0, 0), (0, 0)))

    sq, heads = pl.pallas_call(
        heads_kernel,
        out_shape=(
            jax.ShapeDtypeStruct((Bp, 2, N_SQ), jnp.float32),     # from/to logits
            jax.ShapeDtypeStruct((N_HEADS, Bp, 1), jnp.float32),  # 3 scalar heads
        ),
        grid=(Bp // TB,),
        in_specs=[
            pl.BlockSpec((TB, SEQ, D_MODEL), lambda i: (i, 0, 0)),
            pl.BlockSpec((_PROJ_ROWS, _PROJ_COLS), lambda i: (0, 0)),
            pl.BlockSpec((N_HEADS, _TRUNK_ROWS, H), lambda i: (0, 0, 0)),
        ],
        out_specs=(
            pl.BlockSpec((TB, 2, N_SQ), lambda i: (i, 0, 0)),
            pl.BlockSpec((N_HEADS, TB, 1), lambda i: (0, i, 0)),
        ),
        compiler_params=pltpu.CompilerParams(
            dimension_semantics=("parallel",),
            vmem_limit_bytes=32 * 1024 * 1024,
        ),
    )(boards, projW, trunk)

    sq = sq[:B]
    heads = heads[:, :B, :]
    return {
        "from_squares": sq[:, 0:1, :],      # (B, 1, 64)
        "to_squares": sq[:, 1:2, :],        # (B, 1, 64)
        "game_result": heads[0],            # (B, 1)
        "move_time": heads[1],              # (B, 1)  already * 100
        "moves_until_end": heads[2],        # (B, 1)
    }


# ---- pure-JAX reference for verification -------------------------------------
def reference_forward(boards, p):
    sq = boards[:, 16:, :]
    fs = (sq @ p["ft_w"][0] + p["ft_b"][0])[:, :, 0][:, None, :]
    ts = (sq @ p["ft_w"][1] + p["ft_b"][1])[:, :, 0][:, None, :]

    def pooled(h):
        logits = boards @ p["pool_w"][h] + p["pool_b"][h]         # (B, S, 1)
        w = jax.nn.softmax(logits, axis=1)
        return jnp.sum(boards * w, axis=1)                        # (B, D)

    def deep_head(ctx, h):
        y = jax.nn.relu(ctx @ p["l1_w"][h] + p["l1_b"][h][0])
        for r in range(3):
            base = h * 6 + r * 2
            z = jax.nn.relu(y @ p["rb_w"][base] + p["rb_b"][base][0])
            z = jax.nn.relu(z @ p["rb_w"][base + 1] + p["rb_b"][base + 1][0])
            y = y + z
        y = jax.nn.relu(y @ p["l2_w"][h] + p["l2_b"][h][0])
        return y @ p["l3_w"][h] + p["l3_b"][h][0]

    gr = jnp.tanh(deep_head(pooled(0), 0))
    mt = jax.nn.sigmoid(deep_head(pooled(1), 1)) * 100.0
    ml = deep_head(pooled(2), 2)
    return {"from_squares": fs, "to_squares": ts, "game_result": gr,
            "move_time": mt, "moves_until_end": ml}


def _check(preds, ref):
    for name in ref:
        assert preds[name].shape == ref[name].shape, (
            name, preds[name].shape, ref[name].shape)
        err = float(jnp.max(jnp.abs(preds[name] - ref[name])))
        assert jnp.allclose(preds[name], ref[name], atol=5e-3, rtol=5e-3), (name, err)


if __name__ == "__main__":
    key = jax.random.PRNGKey(0)
    k_boards, k_params, k_boards2 = jax.random.split(key, 3)

    params = init_params(k_params)
    projW, trunk = pack_params(params)

    # small batch (single tile, padded up to 8 rows)
    boards = jax.random.normal(k_boards, (2, SEQ, D_MODEL), jnp.float32)
    preds = jax.block_until_ready(chess_heads_forward(boards, projW, trunk))
    _check(preds, reference_forward(boards, params))

    # batch that exercises multiple grid steps and tail padding
    boards2 = jax.random.normal(k_boards2, (70, SEQ, D_MODEL), jnp.float32)
    preds2 = jax.block_until_ready(chess_heads_forward(boards2, projW, trunk))
    _check(preds2, reference_forward(boards2, params))

    print("KERNEL_OK")
</pallas_src>

<mosaic_0001>
module attributes {stable_mosaic.version = 11 : i64} {
  func.func @heads_kernel(%arg0: i32, %arg1: memref<8x80x32xf32, #tpu.memory_space<vmem>>, %arg2: memref<40x8xf32, #tpu.memory_space<vmem>>, %arg3: memref<3x176x16xf32, #tpu.memory_space<vmem>>, %arg4: memref<8x2x64xf32, #tpu.memory_space<vmem>>, %arg5: memref<3x8x1xf32, #tpu.memory_space<vmem>>) attributes {dimension_semantics = [#tpu.dimension_semantics<parallel>], iteration_bounds = array<i64: 1>, scalar_prefetch = 0 : i64, scratch_operands = 0 : i64, tpu.core_type = #tpu.core_type<tc>, window_params = [{transform_indices = @transform_0, window_bounds = array<i64: 8, 80, 32>}, {pipeline_mode = #tpu.pipeline_mode<synchronous>, transform_indices = @transform_1, window_bounds = array<i64: 40, 8>}, {pipeline_mode = #tpu.pipeline_mode<synchronous>, transform_indices = @transform_2, window_bounds = array<i64: 3, 176, 16>}, {transform_indices = @transform_3, window_bounds = array<i64: 8, 2, 64>}, {transform_indices = @transform_4, window_bounds = array<i64: 3, 8, 1>}]} {
    %c0 = arith.constant 0 : index
    %c0_0 = arith.constant 0 : index
    %c0_1 = arith.constant 0 : index
    %0 = vector.load %arg1[%c0, %c0_0, %c0_1] : memref<8x80x32xf32, #tpu.memory_space<vmem>>, vector<8x80x32xf32>
    %1 = vector.shape_cast %0 : vector<8x80x32xf32> to vector<640x32xf32>
    %c0_2 = arith.constant 0 : index
    %c0_3 = arith.constant 0 : index
    %2 = vector.load %arg2[%c0_2, %c0_3] : memref<40x8xf32, #tpu.memory_space<vmem>>, vector<32x8xf32>
    %c32 = arith.constant 32 : index
    %c0_4 = arith.constant 0 : index
    %3 = vector.load %arg2[%c32, %c0_4] : memref<40x8xf32, #tpu.memory_space<vmem>>, vector<1x8xf32>
    %cst = arith.constant dense<0.000000e+00> : vector<640x8xf32>
    %4 = tpu.matmul %1, %2, %cst {dimension_numbers = #tpu.dot_dimension_numbers<[1], [0], [0], [1], [0, 0, 1, 1], [], []>} : vector<640x32xf32>, vector<32x8xf32>, vector<640x8xf32> -> vector<640x8xf32>
    %5 = vector.broadcast %3 : vector<1x8xf32> to vector<640x8xf32>
    %6 = arith.addf %4, %5 : vector<640x8xf32>
    %7 = vector.shape_cast %6 : vector<640x8xf32> to vector<8x80x8xf32>
    %8 = tpu.transpose %7, [0, 2, 1] : vector<8x80x8xf32> -> vector<8x8x80xf32>
    %9 = vector.extract_strided_slice %8 {offsets = [0, 0, 16], sizes = [8, 2, 64], strides = [1, 1, 1]} : vector<8x8x80xf32> to vector<8x2x64xf32>
    %c0_5 = arith.constant 0 : index
    %c0_6 = arith.constant 0 : index
    %c0_7 = arith.constant 0 : index
    %10 = vector.load %arg4[%c0_5, %c0_6, %c0_7] : memref<8x2x64xf32, #tpu.memory_space<vmem>>, vector<8x2x64xf32>
    tpu.vector_store %arg4[%c0_5, %c0_6, %c0_7], %9 {strides = array<i32>} : memref<8x2x64xf32, #tpu.memory_space<vmem>>, vector<8x2x64xf32>,
    %11 = vector.extract_strided_slice %8 {offsets = [0, 2, 0], sizes = [8, 3, 80], strides = [1, 1, 1]} : vector<8x8x80xf32> to vector<8x3x80xf32>
    %cst_8 = arith.constant dense<0xFF800000> : vector<8x3xf32>
    %12 = vector.multi_reduction <maximumf>, %11, %cst_8 [2] : vector<8x3x80xf32> to vector<8x3xf32>
    %13 = vector.shape_cast %12 : vector<8x3xf32> to vector<8x3x1xf32>
    %14 = vector.broadcast %13 : vector<8x3x1xf32> to vector<8x3x80xf32>
    %15 = arith.subf %11, %14 : vector<8x3x80xf32>
    %16 = math.exp %15 : vector<8x3x80xf32>
    %cst_9 = arith.constant dense<0.000000e+00> : vector<8x3xf32>
    %17 = vector.multi_reduction <add>, %16, %cst_9 [2] : vector<8x3x80xf32> to vector<8x3xf32>
    %18 = vector.shape_cast %17 : vector<8x3xf32> to vector<8x3x1xf32>
    %19 = tpu.reciprocal %18 {approx = true} : vector<8x3x1xf32> -> vector<8x3x1xf32>
    %20 = vector.broadcast %19 : vector<8x3x1xf32> to vector<8x3x80xf32>
    %21 = arith.mulf %16, %20 : vector<8x3x80xf32>
    %c0_10 = arith.constant 0 : index
    %c0_11 = arith.constant 0 : index
    %c0_12 = arith.constant 0 : index
    %22 = vector.load %arg1[%c0_10, %c0_11, %c0_12] : memref<8x80x32xf32, #tpu.memory_space<vmem>>, vector<8x80x32xf32>
    "tpu.trace_start"() <{level = 10 : i32, message = "bhs,bsd->bhd"}> : () -> ()
    %cst_13 = arith.constant dense<0.000000e+00> : vector<8x3x32xf32>
    %23 = tpu.matmul %21, %22, %cst_13 {dimension_numbers = #tpu.dot_dimension_numbers<[2], [1], [1], [2], [0, 0, 0, 1, 1, 2], [0], [0]>} : vector<8x3x80xf32>, vector<8x80x32xf32>, vector<8x3x32xf32> -> vector<8x3x32xf32>
    "tpu.trace_stop"() : () -> ()
    %24 = tpu.transpose %23, [1, 0, 2] : vector<8x3x32xf32> -> vector<3x8x32xf32>
    %c0_14 = arith.constant 0 : index
    %c160 = arith.constant 160 : index
    %c0_15 = arith.constant 0 : index
    %25 = vector.load %arg3[%c0_14, %c160, %c0_15] : memref<3x176x16xf32, #tpu.memory_space<vmem>>, vector<3x16x16xf32>
    %c0_16 = arith.constant 0 : index
    %c0_17 = arith.constant 0 : index
    %c0_18 = arith.constant 0 : index
    %26 = vector.load %arg3[%c0_16, %c0_17, %c0_18] : memref<3x176x16xf32, #tpu.memory_space<vmem>>, vector<3x32x16xf32>
    "tpu.trace_start"() <{level = 10 : i32, message = "hbk,hkm->hbm"}> : () -> ()
    %cst_19 = arith.constant dense<0.000000e+00> : vector<3x8x16xf32>
    %27 = tpu.matmul %24, %26, %cst_19 {dimension_numbers = #tpu.dot_dimension_numbers<[2], [1], [1], [2], [0, 0, 0, 1, 1, 2], [0], [0]>} : vector<3x8x32xf32>, vector<3x32x16xf32>, vector<3x8x16xf32> -> vector<3x8x16xf32>
    "tpu.trace_stop"() : () -> ()
    %28 = vector.extract_strided_slice %25 {offsets = [0, 0, 0], sizes = [3, 1, 16], strides = [1, 1, 1]} : vector<3x16x16xf32> to vector<3x1x16xf32>
    %29 = vector.broadcast %28 : vector<3x1x16xf32> to vector<3x8x16xf32>
    %30 = arith.addf %27, %29 : vector<3x8x16xf32>
    %cst_20 = arith.constant 0.000000e+00 : f32
    %31 = vector.broadcast %cst_20 : f32 to vector<3x8x16xf32>
    %32 = arith.maximumf %30, %31 : vector<3x8x16xf32>
    %c0_21 = arith.constant 0 : index
    %c32_22 = arith.constant 32 : index
    %c0_23 = arith.constant 0 : index
    %33 = vector.load %arg3[%c0_21, %c32_22, %c0_23] : memref<3x176x16xf32, #tpu.memory_space<vmem>>, vector<3x16x16xf32>
    %c0_24 = arith.constant 0 : index
    %c48 = arith.constant 48 : index
    %c0_25 = arith.constant 0 : index
    %34 = vector.load %arg3[%c0_24, %c48, %c0_25] : memref<3x176x16xf32, #tpu.memory_space<vmem>>, vector<3x16x16xf32>
    "tpu.trace_start"() <{level = 10 : i32, message = "hbk,hkm->hbm"}> : () -> ()
    %cst_26 = arith.constant dense<0.000000e+00> : vector<3x8x16xf32>
    %35 = tpu.matmul %32, %33, %cst_26 {dimension_numbers = #tpu.dot_dimension_numbers<[2], [1], [1], [2], [0, 0, 0, 1, 1, 2], [0], [0]>} : vector<3x8x16xf32>, vector<3x16x16xf32>, vector<3x8x16xf32> -> vector<3x8x16xf32>
    "tpu.trace_stop"() : () -> ()
    %36 = vector.extract_strided_slice %25 {offsets = [0, 1, 0], sizes = [3, 1, 16], strides = [1, 1, 1]} : vector<3x16x16xf32> to vector<3x1x16xf32>
    %37 = vector.broadcast %36 : vector<3x1x16xf32> to vector<3x8x16xf32>
    %38 = arith.addf %35, %37 : vector<3x8x16xf32>
    %cst_27 = arith.constant 0.000000e+00 : f32
    %39 = vector.broadcast %cst_27 : f32 to vector<3x8x16xf32>
    %40 = arith.maximumf %38, %39 : vector<3x8x16xf32>
    "tpu.trace_start"() <{level = 10 : i32, message = "hbk,hkm->hbm"}> : () -> ()
    %cst_28 = arith.constant dense<0.000000e+00> : vector<3x8x16xf32>
    %41 = tpu.matmul %40, %34, %cst_28 {dimension_numbers = #tpu.dot_dimension_numbers<[2], [1], [1], [2], [0, 0, 0, 1, 1, 2], [0], [0]>} : vector<3x8x16xf32>, vector<3x16x16xf32>, vector<3x8x16xf32> -> vector<3x8x16xf32>
    "tpu.trace_stop"() : () -> ()
    %42 = vector.extract_strided_slice %25 {offsets = [0, 2, 0], sizes = [3, 1, 16], strides = [1, 1, 1]} : vector<3x16x16xf32> to vector<3x1x16xf32>
    %43 = vector.broadcast %42 : vector<3x1x16xf32> to vector<3x8x16xf32>
    %44 = arith.addf %41, %43 : vector<3x8x16xf32>
    %cst_29 = arith.constant 0.000000e+00 : f32
    %45 = vector.broadcast %cst_29 : f32 to vector<3x8x16xf32>
    %46 = arith.maximumf %44, %45 : vector<3x8x16xf32>
    %47 = arith.addf %32, %46 : vector<3x8x16xf32>
    %c0_30 = arith.constant 0 : index
    %c64 = arith.constant 64 : index
    %c0_31 = arith.constant 0 : index
    %48 = vector.load %arg3[%c0_30, %c64, %c0_31] : memref<3x176x16xf32, #tpu.memory_space<vmem>>, vector<3x16x16xf32>
    %c0_32 = arith.constant 0 : index
    %c80 = arith.constant 80 : index
    %c0_33 = arith.constant 0 : index
    %49 = vector.load %arg3[%c0_32, %c80, %c0_33] : memref<3x176x16xf32, #tpu.memory_space<vmem>>, vector<3x16x16xf32>
    "tpu.trace_start"() <{level = 10 : i32, message = "hbk,hkm->hbm"}> : () -> ()
    %cst_34 = arith.constant dense<0.000000e+00> : vector<3x8x16xf32>
    %50 = tpu.matmul %47, %48, %cst_34 {dimension_numbers = #tpu.dot_dimension_numbers<[2], [1], [1], [2], [0, 0, 0, 1, 1, 2], [0], [0]>} : vector<3x8x16xf32>, vector<3x16x16xf32>, vector<3x8x16xf32> -> vector<3x8x16xf32>
    "tpu.trace_stop"() : () -> ()
    %51 = vector.extract_strided_slice %25 {offsets = [0, 3, 0], sizes = [3, 1, 16], strides = [1, 1, 1]} : vector<3x16x16xf32> to vector<3x1x16xf32>
    %52 = vector.broadcast %51 : vector<3x1x16xf32> to vector<3x8x16xf32>
    %53 = arith.addf %50, %52 : vector<3x8x16xf32>
    %cst_35 = arith.constant 0.000000e+00 : f32
    %54 = vector.broadcast %cst_35 : f32 to vector<3x8x16xf32>
    %55 = arith.maximumf %53, %54 : vector<3x8x16xf32>
    "tpu.trace_start"() <{level = 10 : i32, message = "hbk,hkm->hbm"}> : () -> ()
    %cst_36 = arith.constant dense<0.000000e+00> : vector<3x8x16xf32>
    %56 = tpu.matmul %55, %49, %cst_36 {dimension_numbers = #tpu.dot_dimension_numbers<[2], [1], [1], [2], [0, 0, 0, 1, 1, 2], [0], [0]>} : vector<3x8x16xf32>, vector<3x16x16xf32>, vector<3x8x16xf32> -> vector<3x8x16xf32>
    "tpu.trace_stop"() : () -> ()
    %57 = vector.extract_strided_slice %25 {offsets = [0, 4, 0], sizes = [3, 1, 16], strides = [1, 1, 1]} : vector<3x16x16xf32> to vector<3x1x16xf32>
    %58 = vector.broadcast %57 : vector<3x1x16xf32> to vector<3x8x16xf32>
    %59 = arith.addf %56, %58 : vector<3x8x16xf32>
    %cst_37 = arith.constant 0.000000e+00 : f32
    %60 = vector.broadcast %cst_37 : f32 to vector<3x8x16xf32>
    %61 = arith.maximumf %59, %60 : vector<3x8x16xf32>
    %62 = arith.addf %47, %61 : vector<3x8x16xf32>
    %c0_38 = arith.constant 0 : index
    %c96 = arith.constant 96 : index
    %c0_39 = arith.constant 0 : index
    %63 = vector.load %arg3[%c0_38, %c96, %c0_39] : memref<3x176x16xf32, #tpu.memory_space<vmem>>, vector<3x16x16xf32>
    %c0_40 = arith.constant 0 : index
    %c112 = arith.constant 112 : index
    %c0_41 = arith.constant 0 : index
    %64 = vector.load %arg3[%c0_40, %c112, %c0_41] : memref<3x176x16xf32, #tpu.memory_space<vmem>>, vector<3x16x16xf32>
    "tpu.trace_start"() <{level = 10 : i32, message = "hbk,hkm->hbm"}> : () -> ()
    %cst_42 = arith.constant dense<0.000000e+00> : vector<3x8x16xf32>
    %65 = tpu.matmul %62, %63, %cst_42 {dimension_numbers = #tpu.dot_dimension_numbers<[2], [1], [1], [2], [0, 0, 0, 1, 1, 2], [0], [0]>} : vector<3x8x16xf32>, vector<3x16x16xf32>, vector<3x8x16xf32> -> vector<3x8x16xf32>
    "tpu.trace_stop"() : () -> ()
    %66 = vector.extract_strided_slice %25 {offsets = [0, 5, 0], sizes = [3, 1, 16], strides = [1, 1, 1]} : vector<3x16x16xf32> to vector<3x1x16xf32>
    %67 = vector.broadcast %66 : vector<3x1x16xf32> to vector<3x8x16xf32>
    %68 = arith.addf %65, %67 : vector<3x8x16xf32>
    %cst_43 = arith.constant 0.000000e+00 : f32
    %69 = vector.broadcast %cst_43 : f32 to vector<3x8x16xf32>
    %70 = arith.maximumf %68, %69 : vector<3x8x16xf32>
    "tpu.trace_start"() <{level = 10 : i32, message = "hbk,hkm->hbm"}> : () -> ()
    %cst_44 = arith.constant dense<0.000000e+00> : vector<3x8x16xf32>
    %71 = tpu.matmul %70, %64, %cst_44 {dimension_numbers = #tpu.dot_dimension_numbers<[2], [1], [1], [2], [0, 0, 0, 1, 1, 2], [0], [0]>} : vector<3x8x16xf32>, vector<3x16x16xf32>, vector<3x8x16xf32> -> vector<3x8x16xf32>
    "tpu.trace_stop"() : () -> ()
    %72 = vector.extract_strided_slice %25 {offsets = [0, 6, 0], sizes = [3, 1, 16], strides = [1, 1, 1]} : vector<3x16x16xf32> to vector<3x1x16xf32>
    %73 = vector.broadcast %72 : vector<3x1x16xf32> to vector<3x8x16xf32>
    %74 = arith.addf %71, %73 : vector<3x8x16xf32>
    %cst_45 = arith.constant 0.000000e+00 : f32
    %75 = vector.broadcast %cst_45 : f32 to vector<3x8x16xf32>
    %76 = arith.maximumf %74, %75 : vector<3x8x16xf32>
    %77 = arith.addf %62, %76 : vector<3x8x16xf32>
    %c0_46 = arith.constant 0 : index
    %c128 = arith.constant 128 : index
    %c0_47 = arith.constant 0 : index
    %78 = vector.load %arg3[%c0_46, %c128, %c0_47] : memref<3x176x16xf32, #tpu.memory_space<vmem>>, vector<3x16x16xf32>
    "tpu.trace_start"() <{level = 10 : i32, message = "hbk,hkm->hbm"}> : () -> ()
    %cst_48 = arith.constant dense<0.000000e+00> : vector<3x8x16xf32>
    %79 = tpu.matmul %77, %78, %cst_48 {dimension_numbers = #tpu.dot_dimension_numbers<[2], [1], [1], [2], [0, 0, 0, 1, 1, 2], [0], [0]>} : vector<3x8x16xf32>, vector<3x16x16xf32>, vector<3x8x16xf32> -> vector<3x8x16xf32>
    "tpu.trace_stop"() : () -> ()
    %80 = vector.extract_strided_slice %25 {offsets = [0, 7, 0], sizes = [3, 1, 16], strides = [1, 1, 1]} : vector<3x16x16xf32> to vector<3x1x16xf32>
    %81 = vector.broadcast %80 : vector<3x1x16xf32> to vector<3x8x16xf32>
    %82 = arith.addf %79, %81 : vector<3x8x16xf32>
    %cst_49 = arith.constant 0.000000e+00 : f32
    %83 = vector.broadcast %cst_49 : f32 to vector<3x8x16xf32>
    %84 = arith.maximumf %82, %83 : vector<3x8x16xf32>
    %c0_50 = arith.constant 0 : index
    %c144 = arith.constant 144 : index
    %c0_51 = arith.constant 0 : index
    %85 = vector.load %arg3[%c0_50, %c144, %c0_51] : memref<3x176x16xf32, #tpu.memory_space<vmem>>, vector<3x16x16xf32>
    "tpu.trace_start"() <{level = 10 : i32, message = "hbk,hkm->hbm"}> : () -> ()
    %cst_52 = arith.constant dense<0.000000e+00> : vector<3x8x16xf32>
    %86 = tpu.matmul %84, %85, %cst_52 {dimension_numbers = #tpu.dot_dimension_numbers<[2], [1], [1], [2], [0, 0, 0, 1, 1, 2], [0], [0]>} : vector<3x8x16xf32>, vector<3x16x16xf32>, vector<3x8x16xf32> -> vector<3x8x16xf32>
    "tpu.trace_stop"() : () -> ()
    %87 = vector.extract_strided_slice %25 {offsets = [0, 8, 0], sizes = [3, 1, 16], strides = [1, 1, 1]} : vector<3x16x16xf32> to vector<3x1x16xf32>
    %88 = vector.broadcast %87 : vector<3x1x16xf32> to vector<3x8x16xf32>
    %89 = arith.addf %86, %88 : vector<3x8x16xf32>
    %90 = vector.extract_strided_slice %89 {offsets = [0, 0, 0], sizes = [3, 8, 1], strides = [1, 1, 1]} : vector<3x8x16xf32> to vector<3x8x1xf32>
    %91 = vector.extract_strided_slice %90 {offsets = [0, 0, 0], sizes = [1, 8, 1], strides = [1, 1, 1]} : vector<3x8x1xf32> to vector<1x8x1xf32>
    %92 = math.tanh %91 : vector<1x8x1xf32>
    %93 = vector.extract_strided_slice %90 {offsets = [1, 0, 0], sizes = [1, 8, 1], strides = [1, 1, 1]} : vector<3x8x1xf32> to vector<1x8x1xf32>
    %cst_53 = arith.constant 0.000000e+00 : f32
    %94 = vector.broadcast %cst_53 : f32 to vector<1x8x1xf32>
    %95 = arith.subf %94, %93 : vector<1x8x1xf32>
    %96 = math.exp %95 : vector<1x8x1xf32>
    %cst_54 = arith.constant 1.000000e+00 : f32
    %97 = vector.broadcast %cst_54 : f32 to vector<1x8x1xf32>
    %98 = arith.addf %97, %96 : vector<1x8x1xf32>
    %cst_55 = arith.constant 1.000000e+02 : f32
    %99 = vector.broadcast %cst_55 : f32 to vector<1x8x1xf32>
    %100 = arith.divf %99, %98 : vector<1x8x1xf32>
    %101 = vector.extract_strided_slice %90 {offsets = [2, 0, 0], sizes = [1, 8, 1], strides = [1, 1, 1]} : vector<3x8x1xf32> to vector<1x8x1xf32>
    %102 = tpu.concatenate %92, %100, %101 in 0 : vector<1x8x1xf32>, vector<1x8x1xf32>, vector<1x8x1xf32> -> vector<3x8x1xf32>
    %c0_56 = arith.constant 0 : index
    %c0_57 = arith.constant 0 : index
    %c0_58 = arith.constant 0 : index
    %103 = vector.load %arg5[%c0_56, %c0_57, %c0_58] : memref<3x8x1xf32, #tpu.memory_space<vmem>>, vector<3x8x1xf32>
    tpu.vector_store %arg5[%c0_56, %c0_57, %c0_58], %102 {strides = array<i32>} : memref<3x8x1xf32, #tpu.memory_space<vmem>>, vector<3x8x1xf32>,
    return
  }
  func.func @transform_0(%arg0: i32) -> (i32, i32, i32) {
    %c0_i32 = arith.constant 0 : i32
    %c0_i32_0 = arith.constant 0 : i32
    %c0_i32_1 = arith.constant 0 : i32
    return %arg0, %c0_i32, %c0_i32_0 : i32, i32, i32
  }
  func.func @transform_1(%arg0: i32) -> (i32, i32) {
    %c0_i32 = arith.constant 0 : i32
    %c0_i32_0 = arith.constant 0 : i32
    %c0_i32_1 = arith.constant 0 : i32
    return %c0_i32, %c0_i32_0 : i32, i32
  }
  func.func @transform_2(%arg0: i32) -> (i32, i32, i32) {
    %c0_i32 = arith.constant 0 : i32
    %c0_i32_0 = arith.constant 0 : i32
    %c0_i32_1 = arith.constant 0 : i32
    %c0_i32_2 = arith.constant 0 : i32
    return %c0_i32, %c0_i32_0, %c0_i32_1 : i32, i32, i32
  }
  func.func @transform_3(%arg0: i32) -> (i32, i32, i32) {
    %c0_i32 = arith.constant 0 : i32
    %c0_i32_0 = arith.constant 0 : i32
    %c0_i32_1 = arith.constant 0 : i32
    return %arg0, %c0_i32, %c0_i32_0 : i32, i32, i32
  }
  func.func @transform_4(%arg0: i32) -> (i32, i32, i32) {
    %c0_i32 = arith.constant 0 : i32
    %c0_i32_0 = arith.constant 0 : i32
    %c0_i32_1 = arith.constant 0 : i32
    return %c0_i32, %arg0, %c0_i32_0 : i32, i32, i32
  }
}

</mosaic_0001>

<llo_original>
// kernel: chess_heads_forward.1
$region0: #{chess_heads_forward.1}
  #allocation0 [shape = 'u32[]', space=smem, size = 0x4, offset = 0x4, fixed_abs, tag = 'smem constant byte address 0x4 - core index']
  #allocation1 [shape = 'u32[72,128]{1,0:T(1,128)}', space=vmem, size = 0x9000, scoped, tag = 'internal scratch']
  %s0 = inlined_call_operand.vmem [shape: f32[8,80,32], index: 0, kind: input, shape index: {}]
  %s1 = inlined_call_operand.vmem [shape: f32[40,8], index: 1, kind: input, shape index: {}]
  %s2 = inlined_call_operand.vmem [shape: f32[3,176,16], index: 2, kind: input, shape index: {}]
  %s3 = inlined_call_operand.vmem [shape: f32[8,2,64], index: 3, kind: output, shape index: {0}]
  %s4 = inlined_call_operand.vmem [shape: f32[3,8,1], index: 4, kind: output, shape index: {1}]
  %5 = xla_tuple %s3, %s4
  %s6 = sld [smem:[#allocation0]]
  $region30: #{chess_heads_forward.1} parent=0
    _
  %s8 = ssub.s32 1, %s6
  %s9 = scalar_select 0, %s8, %s6
  // Predicated region
  $region2: #{chess_heads_forward.1} parent=0 // pred_check
    _
  $region3: #{chess_heads_forward.1} parent=0 // pred_check_branch
    %11 = sbr.rel (0) target = $region5
  $region4: #{chess_heads_forward.1} parent=0 // pred_region
    _
  $region5: #{chess_heads_forward.1} parent=0 // pred_fallthru
    _
  // Predicated region
  $region6: #{chess_heads_forward.1} parent=0 // pred_check
    _
  $region7: #{chess_heads_forward.1} parent=0 // pred_check_branch
    %13 = sbr.rel (0) target = $region9
  $region8: #{chess_heads_forward.1} parent=0 // pred_region
    _
  $region9: #{chess_heads_forward.1} parent=0 // pred_fallthru
    _
  // Predicated region
  $region10: #{chess_heads_forward.1} parent=0 // pred_check
    _
  $region11: #{chess_heads_forward.1} parent=0 // pred_check_branch
    %15 = sbr.rel (0) target = $region13
  $region12: #{chess_heads_forward.1} parent=0 // pred_region
    _
  $region13: #{chess_heads_forward.1} parent=0 // pred_fallthru
    _
  %v16 = vld [vmem:[%s0] sm:$0xff]
  %v17 = vld [vmem:[%s0 + $0x8] sm:$0xff]
  %v18 = vld [vmem:[%s0 + $0x10] sm:$0xff]
  %v19 = vld [vmem:[%s0 + $0x18] sm:$0xff]
  %v20 = vld [vmem:[%s0 + $0x20] sm:$0xff]
  %v21 = vld [vmem:[%s0 + $0x28] sm:$0xff]
  %v22 = vld [vmem:[%s0 + $0x30] sm:$0xff]
  %v23 = vld [vmem:[%s0 + $0x38] sm:$0xff]
  %v24 = vld [vmem:[%s0 + $0x40] sm:$0xff]
  %v25 = vld [vmem:[%s0 + $0x48] sm:$0xff]
  %v26 = vld [vmem:[%s0 + $0x50] sm:$0xff]
  %v27 = vld [vmem:[%s0 + $0x58] sm:$0xff]
  %v28 = vld [vmem:[%s0 + $0x60] sm:$0xff]
  %v29 = vld [vmem:[%s0 + $0x68] sm:$0xff]
  %v30 = vld [vmem:[%s0 + $0x70] sm:$0xff]
  %v31 = vld [vmem:[%s0 + $0x78] sm:$0xff]
  %v32 = vld [vmem:[%s0 + $0x80] sm:$0xff]
  %v33 = vld [vmem:[%s0 + $0x88] sm:$0xff]
  %v34 = vld [vmem:[%s0 + $0x90] sm:$0xff]
  %v35 = vld [vmem:[%s0 + $0x98] sm:$0xff]
  %v36 = vld [vmem:[%s0 + $0xa0] sm:$0xff]
  %v37 = vld [vmem:[%s0 + $0xa8] sm:$0xff]
  %v38 = vld [vmem:[%s0 + $0xb0] sm:$0xff]
  %v39 = vld [vmem:[%s0 + $0xb8] sm:$0xff]
  %v40 = vld [vmem:[%s0 + $0xc0] sm:$0xff]
  %v41 = vld [vmem:[%s0 + $0xc8] sm:$0xff]
  %v42 = vld [vmem:[%s0 + $0xd0] sm:$0xff]
  %v43 = vld [vmem:[%s0 + $0xd8] sm:$0xff]
  %v44 = vld [vmem:[%s0 + $0xe0] sm:$0xff]
  %v45 = vld [vmem:[%s0 + $0xe8] sm:$0xff]
  %v46 = vld [vmem:[%s0 + $0xf0] sm:$0xff]
  %v47 = vld [vmem:[%s0 + $0xf8] sm:$0xff]
  %v48 = vld [vmem:[%s0 + $0x100] sm:$0xff]
  %v49 = vld [vmem:[%s0 + $0x108] sm:$0xff]
  %v50 = vld [vmem:[%s0 + $0x110] sm:$0xff]
  %v51 = vld [vmem:[%s0 + $0x118] sm:$0xff]
  %v52 = vld [vmem:[%s0 + $0x120] sm:$0xff]
  %v53 = vld [vmem:[%s0 + $0x128] sm:$0xff]
  %v54 = vld [vmem:[%s0 + $0x130] sm:$0xff]
  %v55 = vld [vmem:[%s0 + $0x138] sm:$0xff]
  %v56 = vld [vmem:[%s0 + $0x140] sm:$0xff]
  %v57 = vld [vmem:[%s0 + $0x148] sm:$0xff]
  %v58 = vld [vmem:[%s0 + $0x150] sm:$0xff]
  %v59 = vld [vmem:[%s0 + $0x158] sm:$0xff]
  %v60 = vld [vmem:[%s0 + $0x160] sm:$0xff]
  %v61 = vld [vmem:[%s0 + $0x168] sm:$0xff]
  %v62 = vld [vmem:[%s0 + $0x170] sm:$0xff]
  %v63 = vld [vmem:[%s0 + $0x178] sm:$0xff]
  %v64 = vld [vmem:[%s0 + $0x180] sm:$0xff]
  %v65 = vld [vmem:[%s0 + $0x188] sm:$0xff]
  %v66 = vld [vmem:[%s0 + $0x190] sm:$0xff]
  %v67 = vld [vmem:[%s0 + $0x198] sm:$0xff]
  %v68 = vld [vmem:[%s0 + $0x1a0] sm:$0xff]
  %v69 = vld [vmem:[%s0 + $0x1a8] sm:$0xff]
  %v70 = vld [vmem:[%s0 + $0x1b0] sm:$0xff]
  %v71 = vld [vmem:[%s0 + $0x1b8] sm:$0xff]
  %v72 = vld [vmem:[%s0 + $0x1c0] sm:$0xff]
  %v73 = vld [vmem:[%s0 + $0x1c8] sm:$0xff]
  %v74 = vld [vmem:[%s0 + $0x1d0] sm:$0xff]
  %v75 = vld [vmem:[%s0 + $0x1d8] sm:$0xff]
  %v76 = vld [vmem:[%s0 + $0x1e0] sm:$0xff]
  %v77 = vld [vmem:[%s0 + $0x1e8] sm:$0xff]
  %v78 = vld [vmem:[%s0 + $0x1f0] sm:$0xff]
  %v79 = vld [vmem:[%s0 + $0x1f8] sm:$0xff]
  %v80 = vld [vmem:[%s0 + $0x200] sm:$0xff]
  %v81 = vld [vmem:[%s0 + $0x208] sm:$0xff]
  %v82 = vld [vmem:[%s0 + $0x210] sm:$0xff]
  %v83 = vld [vmem:[%s0 + $0x218] sm:$0xff]
  %v84 = vld [vmem:[%s0 + $0x220] sm:$0xff]
  %v85 = vld [vmem:[%s0 + $0x228] sm:$0xff]
  %v86 = vld [vmem:[%s0 + $0x230] sm:$0xff]
  %v87 = vld [vmem:[%s0 + $0x238] sm:$0xff]
  %v88 = vld [vmem:[%s0 + $0x240] sm:$0xff]
  %v89 = vld [vmem:[%s0 + $0x248] sm:$0xff]
  %v90 = vld [vmem:[%s0 + $0x250] sm:$0xff]
  %v91 = vld [vmem:[%s0 + $0x258] sm:$0xff]
  %v92 = vld [vmem:[%s0 + $0x260] sm:$0xff]
  %v93 = vld [vmem:[%s0 + $0x268] sm:$0xff]
  %v94 = vld [vmem:[%s0 + $0x270] sm:$0xff]
  %v95 = vld [vmem:[%s0 + $0x278] sm:$0xff]
  %v96 = vld [vmem:[%s1] sm:$0xff]
  %v97 = vld [vmem:[%s1 + $0x8] sm:$0xff]
  %v98 = vld [vmem:[%s1 + $0x10] sm:$0xff]
  %v99 = vld [vmem:[%s1 + $0x18] sm:$0xff]
  %v100 = vld [vmem:[%s1 + $0x20] sm:$0x1]
  %v101 = vperm.slane %v100, 0
  %vm102 = vcmask 261120
  %v104 = vsel %vm102, %v16, 0
  %v107 = vsel %vm102, %v17, 0
  %v110 = vsel %vm102, %v18, 0
  %v113 = vsel %vm102, %v19, 0
  %v116 = vsel %vm102, %v20, 0
  %v119 = vsel %vm102, %v21, 0
  %v122 = vsel %vm102, %v22, 0
  %v125 = vsel %vm102, %v23, 0
  %v128 = vsel %vm102, %v24, 0
  %v131 = vsel %vm102, %v25, 0
  %v134 = vsel %vm102, %v26, 0
  %v137 = vsel %vm102, %v27, 0
  %v140 = vsel %vm102, %v28, 0
  %v143 = vsel %vm102, %v29, 0
  %v146 = vsel %vm102, %v30, 0
  %v149 = vsel %vm102, %v31, 0
  %v152 = vsel %vm102, %v32, 0
  %v155 = vsel %vm102, %v33, 0
  %v158 = vsel %vm102, %v34, 0
  %v161 = vsel %vm102, %v35, 0
  %v164 = vsel %vm102, %v36, 0
  %v167 = vsel %vm102, %v37, 0
  %v170 = vsel %vm102, %v38, 0
  %v173 = vsel %vm102, %v39, 0
  %v176 = vsel %vm102, %v40, 0
  %v179 = vsel %vm102, %v41, 0
  %v182 = vsel %vm102, %v42, 0
  %v185 = vsel %vm102, %v43, 0
  %v188 = vsel %vm102, %v44, 0
  %v191 = vsel %vm102, %v45, 0
  %v194 = vsel %vm102, %v46, 0
  %v197 = vsel %vm102, %v47, 0
  %v200 = vsel %vm102, %v48, 0
  %v203 = vsel %vm102, %v49, 0
  %v206 = vsel %vm102, %v50, 0
  %v209 = vsel %vm102, %v51, 0
  %v212 = vsel %vm102, %v52, 0
  %v215 = vsel %vm102, %v53, 0
  %v218 = vsel %vm102, %v54, 0
  %v221 = vsel %vm102, %v55, 0
  %v224 = vsel %vm102, %v56, 0
  %v227 = vsel %vm102, %v57, 0
  %v230 = vsel %vm102, %v58, 0
  %v233 = vsel %vm102, %v59, 0
  %v236 = vsel %vm102, %v60, 0
  %v239 = vsel %vm102, %v61, 0
  %v242 = vsel %vm102, %v62, 0
  %v245 = vsel %vm102, %v63, 0
  %v248 = vsel %vm102, %v64, 0
  %v251 = vsel %vm102, %v65, 0
  %v254 = vsel %vm102, %v66, 0
  %v257 = vsel %vm102, %v67, 0
  %v260 = vsel %vm102, %v68, 0
  %v263 = vsel %vm102, %v69, 0
  %v266 = vsel %vm102, %v70, 0
  %v269 = vsel %vm102, %v71, 0
  %v272 = vsel %vm102, %v72, 0
  %v275 = vsel %vm102, %v73, 0
  %v278 = vsel %vm102, %v74, 0
  %v281 = vsel %vm102, %v75, 0
  %v284 = vsel %vm102, %v76, 0
  %v287 = vsel %vm102, %v77, 0
  %v290 = vsel %vm102, %v78, 0
  %v293 = vsel %vm102, %v79, 0
  %v296 = vsel %vm102, %v80, 0
  %v299 = vsel %vm102, %v81, 0
  %v302 = vsel %vm102, %v82, 0
  %v305 = vsel %vm102, %v83, 0
  %v308 = vsel %vm102, %v84, 0
  %v311 = vsel %vm102, %v85, 0
  %v314 = vsel %vm102, %v86, 0
  %v317 = vsel %vm102, %v87, 0
  %v320 = vsel %vm102, %v88, 0
  %v323 = vsel %vm102, %v89, 0
  %v326 = vsel %vm102, %v90, 0
  %v329 = vsel %vm102, %v91, 0
  %v332 = vsel %vm102, %v92, 0
  %v335 = vsel %vm102, %v93, 0
  %v338 = vsel %vm102, %v94, 0
  %v341 = vsel %vm102, %v95, 0
  %343 = vmatpush.msra.mxu0 0.0
  %344 = vmatpush.msra.mxu0 0.0
  %345 = vmatpush.msra.mxu0 0.0
  %346 = vmatpush.msra.mxu0 0.0
  %347 = vmatpush.msra.mxu0 0.0
  %348 = vmatpush.msra.mxu0 0.0
  %349 = vmatpush.msra.mxu0 0.0
  %350 = vmatpush.msra.mxu0 0.0
  %351 = vmatpush.msra.mxu0 0.0
  %352 = vmatpush.msra.mxu0 0.0
  %353 = vmatpush.msra.mxu0 0.0
  %354 = vmatpush.msra.mxu0 0.0
  %355 = vmatpush.msra.mxu0 %v99
  %356 = vmatpush.msra.mxu0 %v98
  %357 = vmatpush.msra.mxu0 %v97
  %358 = vmatpush.msra.mxu0 %v96
  %359 = vmatmul.f32.gmra.mxu0 %v104
  %v360 = vpop.f32.mrf.mxu0
  %v361 = vadd.f32 %v101, %v360
  %362 = vmatmul.f32.gmra.mxu0 %v107
  %v363 = vpop.f32.mrf.mxu0
  %v364 = vadd.f32 %v101, %v363
  %365 = vmatmul.f32.gmra.mxu0 %v110
  %v366 = vpop.f32.mrf.mxu0
  %v367 = vadd.f32 %v101, %v366
  %368 = vmatmul.f32.gmra.mxu0 %v113
  %v369 = vpop.f32.mrf.mxu0
  %v370 = vadd.f32 %v101, %v369
  %371 = vmatmul.f32.gmra.mxu0 %v116
  %v372 = vpop.f32.mrf.mxu0
  %v373 = vadd.f32 %v101, %v372
  %374 = vmatmul.f32.gmra.mxu0 %v119
  %v375 = vpop.f32.mrf.mxu0
  %v376 = vadd.f32 %v101, %v375
  %377 = vmatmul.f32.gmra.mxu0 %v122
  %v378 = vpop.f32.mrf.mxu0
  %v379 = vadd.f32 %v101, %v378
  %380 = vmatmul.f32.gmra.mxu0 %v125
  %v381 = vpop.f32.mrf.mxu0
  %v382 = vadd.f32 %v101, %v381
  %383 = vmatmul.f32.gmra.mxu0 %v128
  %v384 = vpop.f32.mrf.mxu0
  %v385 = vadd.f32 %v101, %v384
  %386 = vmatmul.f32.gmra.mxu0 %v131
  %v387 = vpop.f32.mrf.mxu0
  %v388 = vadd.f32 %v101, %v387
  %389 = vmatmul.f32.gmra.mxu0 %v134
  %v390 = vpop.f32.mrf.mxu0
  %v391 = vadd.f32 %v101, %v390
  %392 = vmatmul.f32.gmra.mxu0 %v137
  %v393 = vpop.f32.mrf.mxu0
  %v394 = vadd.f32 %v101, %v393
  %395 = vmatmul.f32.gmra.mxu0 %v140
  %v396 = vpop.f32.mrf.mxu0
  %v397 = vadd.f32 %v101, %v396
  %398 = vmatmul.f32.gmra.mxu0 %v143
  %v399 = vpop.f32.mrf.mxu0
  %v400 = vadd.f32 %v101, %v399
  %401 = vmatmul.f32.gmra.mxu0 %v146
  %v402 = vpop.f32.mrf.mxu0
  %v403 = vadd.f32 %v101, %v402
  %404 = vmatmul.f32.gmra.mxu0 %v149
  %v405 = vpop.f32.mrf.mxu0
  %v406 = vadd.f32 %v101, %v405
  %407 = vmatmul.f32.gmra.mxu0 %v152
  %v408 = vpop.f32.mrf.mxu0
  %v409 = vadd.f32 %v101, %v408
  %410 = vmatmul.f32.gmra.mxu0 %v155
  %v411 = vpop.f32.mrf.mxu0
  %v412 = vadd.f32 %v101, %v411
  %413 = vmatmul.f32.gmra.mxu0 %v158
  %v414 = vpop.f32.mrf.mxu0
  %v415 = vadd.f32 %v101, %v414
  %416 = vmatmul.f32.gmra.mxu0 %v161
  %v417 = vpop.f32.mrf.mxu0
  %v418 = vadd.f32 %v101, %v417
  %419 = vmatmul.f32.gmra.mxu0 %v164
  %v420 = vpop.f32.mrf.mxu0
  %v421 = vadd.f32 %v101, %v420
  %422 = vmatmul.f32.gmra.mxu0 %v167
  %v423 = vpop.f32.mrf.mxu0
  %v424 = vadd.f32 %v101, %v423
  %425 = vmatmul.f32.gmra.mxu0 %v170
  %v426 = vpop.f32.mrf.mxu0
  %v427 = vadd.f32 %v101, %v426
  %428 = vmatmul.f32.gmra.mxu0 %v173
  %v429 = vpop.f32.mrf.mxu0
  %v430 = vadd.f32 %v101, %v429
  %431 = vmatmul.f32.gmra.mxu0 %v176
  %v432 = vpop.f32.mrf.mxu0
  %v433 = vadd.f32 %v101, %v432
  %434 = vmatmul.f32.gmra.mxu0 %v179
  %v435 = vpop.f32.mrf.mxu0
  %v436 = vadd.f32 %v101, %v435
  %437 = vmatmul.f32.gmra.mxu0 %v182
  %v438 = vpop.f32.mrf.mxu0
  %v439 = vadd.f32 %v101, %v438
  %440 = vmatmul.f32.gmra.mxu0 %v185
  %v441 = vpop.f32.mrf.mxu0
  %v442 = vadd.f32 %v101, %v441
  %443 = vmatmul.f32.gmra.mxu0 %v188
  %v444 = vpop.f32.mrf.mxu0
  %v445 = vadd.f32 %v101, %v444
  %446 = vmatmul.f32.gmra.mxu0 %v191
  %v447 = vpop.f32.mrf.mxu0
  %v448 = vadd.f32 %v101, %v447
  %449 = vmatmul.f32.gmra.mxu0 %v194
  %v450 = vpop.f32.mrf.mxu0
  %v451 = vadd.f32 %v101, %v450
  %452 = vmatmul.f32.gmra.mxu0 %v197
  %v453 = vpop.f32.mrf.mxu0
  %v454 = vadd.f32 %v101, %v453
  %455 = vmatmul.f32.gmra.mxu0 %v200
  %v456 = vpop.f32.mrf.mxu0
  %v457 = vadd.f32 %v101, %v456
  %458 = vmatmul.f32.gmra.mxu0 %v203
  %v459 = vpop.f32.mrf.mxu0
  %v460 = vadd.f32 %v101, %v459
  %461 = vmatmul.f32.gmra.mxu0 %v206
  %v462 = vpop.f32.mrf.mxu0
  %v463 = vadd.f32 %v101, %v462
  %464 = vmatmul.f32.gmra.mxu0 %v209
  %v465 = vpop.f32.mrf.mxu0
  %v466 = vadd.f32 %v101, %v465
  %467 = vmatmul.f32.gmra.mxu0 %v212
  %v468 = vpop.f32.mrf.mxu0
  %v469 = vadd.f32 %v101, %v468
  %470 = vmatmul.f32.gmra.mxu0 %v215
  %v471 = vpop.f32.mrf.mxu0
  %v472 = vadd.f32 %v101, %v471
  %473 = vmatmul.f32.gmra.mxu0 %v218
  %v474 = vpop.f32.mrf.mxu0
  %v475 = vadd.f32 %v101, %v474
  %476 = vmatmul.f32.gmra.mxu0 %v221
  %v477 = vpop.f32.mrf.mxu0
  %v478 = vadd.f32 %v101, %v477
  %479 = vmatmul.f32.gmra.mxu0 %v224
  %v480 = vpop.f32.mrf.mxu0
  %v481 = vadd.f32 %v101, %v480
  %482 = vmatmul.f32.gmra.mxu0 %v227
  %v483 = vpop.f32.mrf.mxu0
  %v484 = vadd.f32 %v101, %v483
  %485 = vmatmul.f32.gmra.mxu0 %v230
  %v486 = vpop.f32.mrf.mxu0
  %v487 = vadd.f32 %v101, %v486
  %488 = vmatmul.f32.gmra.mxu0 %v233
  %v489 = vpop.f32.mrf.mxu0
  %v490 = vadd.f32 %v101, %v489
  %491 = vmatmul.f32.gmra.mxu0 %v236
  %v492 = vpop.f32.mrf.mxu0
  %v493 = vadd.f32 %v101, %v492
  %494 = vmatmul.f32.gmra.mxu0 %v239
  %v495 = vpop.f32.mrf.mxu0
  %v496 = vadd.f32 %v101, %v495
  %497 = vmatmul.f32.gmra.mxu0 %v242
  %v498 = vpop.f32.mrf.mxu0
  %v499 = vadd.f32 %v101, %v498
  %500 = vmatmul.f32.gmra.mxu0 %v245
  %v501 = vpop.f32.mrf.mxu0
  %v502 = vadd.f32 %v101, %v501
  %503 = vmatmul.f32.gmra.mxu0 %v248
  %v504 = vpop.f32.mrf.mxu0
  %v505 = vadd.f32 %v101, %v504
  %506 = vmatmul.f32.gmra.mxu0 %v251
  %v507 = vpop.f32.mrf.mxu0
  %v508 = vadd.f32 %v101, %v507
  %509 = vmatmul.f32.gmra.mxu0 %v254
  %v510 = vpop.f32.mrf.mxu0
  %v511 = vadd.f32 %v101, %v510
  %512 = vmatmul.f32.gmra.mxu0 %v257
  %v513 = vpop.f32.mrf.mxu0
  %v514 = vadd.f32 %v101, %v513
  %515 = vmatmul.f32.gmra.mxu0 %v260
  %v516 = vpop.f32.mrf.mxu0
  %v517 = vadd.f32 %v101, %v516
  %518 = vmatmul.f32.gmra.mxu0 %v263
  %v519 = vpop.f32.mrf.mxu0
  %v520 = vadd.f32 %v101, %v519
  %521 = vmatmul.f32.gmra.mxu0 %v266
  %v522 = vpop.f32.mrf.mxu0
  %v523 = vadd.f32 %v101, %v522
  %524 = vmatmul.f32.gmra.mxu0 %v269
  %v525 = vpop.f32.mrf.mxu0
  %v526 = vadd.f32 %v101, %v525
  %527 = vmatmul.f32.gmra.mxu0 %v272
  %v528 = vpop.f32.mrf.mxu0
  %v529 = vadd.f32 %v101, %v528
  %530 = vmatmul.f32.gmra.mxu0 %v275
  %v531 = vpop.f32.mrf.mxu0
  %v532 = vadd.f32 %v101, %v531
  %533 = vmatmul.f32.gmra.mxu0 %v278
  %v534 = vpop.f32.mrf.mxu0
  %v535 = vadd.f32 %v101, %v534
  %536 = vmatmul.f32.gmra.mxu0 %v281
  %v537 = vpop.f32.mrf.mxu0
  %v538 = vadd.f32 %v101, %v537
  %539 = vmatmul.f32.gmra.mxu0 %v284
  %v540 = vpop.f32.mrf.mxu0
  %v541 = vadd.f32 %v101, %v540
  %542 = vmatmul.f32.gmra.mxu0 %v287
  %v543 = vpop.f32.mrf.mxu0
  %v544 = vadd.f32 %v101, %v543
  %545 = vmatmul.f32.gmra.mxu0 %v290
  %v546 = vpop.f32.mrf.mxu0
  %v547 = vadd.f32 %v101, %v546
  %548 = vmatmul.f32.gmra.mxu0 %v293
  %v549 = vpop.f32.mrf.mxu0
  %v550 = vadd.f32 %v101, %v549
  %551 = vmatmul.f32.gmra.mxu0 %v296
  %v552 = vpop.f32.mrf.mxu0
  %v553 = vadd.f32 %v101, %v552
  %554 = vmatmul.f32.gmra.mxu0 %v299
  %v555 = vpop.f32.mrf.mxu0
  %v556 = vadd.f32 %v101, %v555
  %557 = vmatmul.f32.gmra.mxu0 %v302
  %v558 = vpop.f32.mrf.mxu0
  %v559 = vadd.f32 %v101, %v558
  %560 = vmatmul.f32.gmra.mxu0 %v305
  %v561 = vpop.f32.mrf.mxu0
  %v562 = vadd.f32 %v101, %v561
  %563 = vmatmul.f32.gmra.mxu0 %v308
  %v564 = vpop.f32.mrf.mxu0
  %v565 = vadd.f32 %v101, %v564
  %566 = vmatmul.f32.gmra.mxu0 %v311
  %v567 = vpop.f32.mrf.mxu0
  %v568 = vadd.f32 %v101, %v567
  %569 = vmatmul.f32.gmra.mxu0 %v314
  %v570 = vpop.f32.mrf.mxu0
  %v571 = vadd.f32 %v101, %v570
  %572 = vmatmul.f32.gmra.mxu0 %v317
  %v573 = vpop.f32.mrf.mxu0
  %v574 = vadd.f32 %v101, %v573
  %575 = vmatmul.f32.gmra.mxu0 %v320
  %v576 = vpop.f32.mrf.mxu0
  %v577 = vadd.f32 %v101, %v576
  %578 = vmatmul.f32.gmra.mxu0 %v323
  %v579 = vpop.f32.mrf.mxu0
  %v580 = vadd.f32 %v101, %v579
  %581 = vmatmul.f32.gmra.mxu0 %v326
  %v582 = vpop.f32.mrf.mxu0
  %v583 = vadd.f32 %v101, %v582
  %584 = vmatmul.f32.gmra.mxu0 %v329
  %v585 = vpop.f32.mrf.mxu0
  %v586 = vadd.f32 %v101, %v585
  %587 = vmatmul.f32.gmra.mxu0 %v332
  %v588 = vpop.f32.mrf.mxu0
  %v589 = vadd.f32 %v101, %v588
  %590 = vmatmul.f32.gmra.mxu0 %v335
  %v591 = vpop.f32.mrf.mxu0
  %v592 = vadd.f32 %v101, %v591
  %593 = vmatmul.f32.gmra.mxu0 %v338
  %v594 = vpop.f32.mrf.mxu0
  %v595 = vadd.f32 %v101, %v594
  %596 = vmatmul.f32.gmra.mxu0 %v341
  %v597 = vpop.f32.mrf.mxu0
  %v598 = vadd.f32 %v101, %v597
  %599 = vdwg.mxu0
  %600 = vxpose.xlu0.b32.start [1/16] %v361, 128
  %601 = vxpose.xlu0.b32.cont [2/16] %v364, 128
  %602 = vxpose.xlu0.b32.cont [3/16] %v367, 128
  %603 = vxpose.xlu0.b32.cont [4/16] %v370, 128
  %604 = vxpose.xlu0.b32.cont [5/16] %v373, 128
  %605 = vxpose.xlu0.b32.cont [6/16] %v376, 128
  %606 = vxpose.xlu0.b32.cont [7/16] %v379, 128
  %607 = vxpose.xlu0.b32.cont [8/16] %v382, 128
  %608 = vxpose.xlu0.b32.cont [9/16] %v385, 128
  %609 = vxpose.xlu0.b32.cont [10/16] %v388, 128
  %610 = vxpose.xlu0.b32.cont [11/16] 0.0, 128
  %611 = vxpose.xlu0.b32.cont [12/16] 0.0, 128
  %612 = vxpose.xlu0.b32.cont [13/16] 0.0, 128
  %613 = vxpose.xlu0.b32.cont [14/16] 0.0, 128
  %614 = vxpose.xlu0.b32.cont [15/16] 0.0, 128
  %615 = vxpose.xlu0.b32.end [16/16] 0.0, 128
  %v616 = vpop.trf.xlu0
  %v617 = vpop.trf.xlu0
  %v618 = vpop.trf.xlu0
  %v619 = vpop.trf.xlu0
  %v620 = vpop.trf.xlu0
  %v621 = vpop.trf.xlu0
  %v622 = vpop.trf.xlu0
  %v623 = vpop.trf.xlu0
  %v624 = vpop.trf.xlu0
  %v625 = vpop.trf.xlu0
  %v626 = vpop.trf.xlu0
  %v627 = vpop.trf.xlu0
  %v628 = vpop.trf.xlu0
  %v629 = vpop.trf.xlu0
  %v630 = vpop.trf.xlu0
  %v631 = vpop.trf.xlu0
  %632 = vxpose.xlu0.b32.start [1/16] %v391, 128
  %633 = vxpose.xlu0.b32.cont [2/16] %v394, 128
  %634 = vxpose.xlu0.b32.cont [3/16] %v397, 128
  %635 = vxpose.xlu0.b32.cont [4/16] %v400, 128
  %636 = vxpose.xlu0.b32.cont [5/16] %v403, 128
  %637 = vxpose.xlu0.b32.cont [6/16] %v406, 128
  %638 = vxpose.xlu0.b32.cont [7/16] %v409, 128
  %639 = vxpose.xlu0.b32.cont [8/16] %v412, 128
  %640 = vxpose.xlu0.b32.cont [9/16] %v415, 128
  %641 = vxpose.xlu0.b32.cont [10/16] %v418, 128
  %642 = vxpose.xlu0.b32.cont [11/16] 0.0, 128
  %643 = vxpose.xlu0.b32.cont [12/16] 0.0, 128
  %644 = vxpose.xlu0.b32.cont [13/16] 0.0, 128
  %645 = vxpose.xlu0.b32.cont [14/16] 0.0, 128
  %646 = vxpose.xlu0.b32.cont [15/16] 0.0, 128
  %647 = vxpose.xlu0.b32.end [16/16] 0.0, 128
  %v648 = vpop.trf.xlu0
  %v649 = vpop.trf.xlu0
  %v650 = vpop.trf.xlu0
  %v651 = vpop.trf.xlu0
  %v652 = vpop.trf.xlu0
  %v653 = vpop.trf.xlu0
  %v654 = vpop.trf.xlu0
  %v655 = vpop.trf.xlu0
  %v656 = vpop.trf.xlu0
  %v657 = vpop.trf.xlu0
  %v658 = vpop.trf.xlu0
  %v659 = vpop.trf.xlu0
  %v660 = vpop.trf.xlu0
  %v661 = vpop.trf.xlu0
  %v662 = vpop.trf.xlu0
  %v663 = vpop.trf.xlu0
  %664 = vxpose.xlu0.b32.start [1/16] %v421, 128
  %665 = vxpose.xlu0.b32.cont [2/16] %v424, 128
  %666 = vxpose.xlu0.b32.cont [3/16] %v427, 128
  %667 = vxpose.xlu0.b32.cont [4/16] %v430, 128
  %668 = vxpose.xlu0.b32.cont [5/16] %v433, 128
  %669 = vxpose.xlu0.b32.cont [6/16] %v436, 128
  %670 = vxpose.xlu0.b32.cont [7/16] %v439, 128
  %671 = vxpose.xlu0.b32.cont [8/16] %v442, 128
  %672 = vxpose.xlu0.b32.cont [9/16] %v445, 128
  %673 = vxpose.xlu0.b32.cont [10/16] %v448, 128
  %674 = vxpose.xlu0.b32.cont [11/16] 0.0, 128
  %675 = vxpose.xlu0.b32.cont [12/16] 0.0, 128
  %676 = vxpose.xlu0.b32.cont [13/16] 0.0, 128
  %677 = vxpose.xlu0.b32.cont [14/16] 0.0, 128
  %678 = vxpose.xlu0.b32.cont [15/16] 0.0, 128
  %679 = vxpose.xlu0.b32.end [16/16] 0.0, 128
  %v680 = vpop.trf.xlu0
  %v681 = vpop.trf.xlu0
  %v682 = vpop.trf.xlu0
  %v683 = vpop.trf.xlu0
  %v684 = vpop.trf.xlu0
  %v685 = vpop.trf.xlu0
  %v686 = vpop.trf.xlu0
  %v687 = vpop.trf.xlu0
  %v688 = vpop.trf.xlu0
  %v689 = vpop.trf.xlu0
  %v690 = vpop.trf.xlu0
  %v691 = vpop.trf.xlu0
  %v692 = vpop.trf.xlu0
  %v693 = vpop.trf.xlu0
  %v694 = vpop.trf.xlu0
  %v695 = vpop.trf.xlu0
  %696 = vxpose.xlu0.b32.start [1/16] %v451, 128
  %697 = vxpose.xlu0.b32.cont [2/16] %v454, 128
  %698 = vxpose.xlu0.b32.cont [3/16] %v457, 128
  %699 = vxpose.xlu0.b32.cont [4/16] %v460, 128
  %700 = vxpose.xlu0.b32.cont [5/16] %v463, 128
  %701 = vxpose.xlu0.b32.cont [6/16] %v466, 128
  %702 = vxpose.xlu0.b32.cont [7/16] %v469, 128
  %703 = vxpose.xlu0.b32.cont [8/16] %v472, 128
  %704 = vxpose.xlu0.b32.cont [9/16] %v475, 128
  %705 = vxpose.xlu0.b32.cont [10/16] %v478, 128
  %706 = vxpose.xlu0.b32.cont [11/16] 0.0, 128
  %707 = vxpose.xlu0.b32.cont [12/16] 0.0, 128
  %708 = vxpose.xlu0.b32.cont [13/16] 0.0, 128
  %709 = vxpose.xlu0.b32.cont [14/16] 0.0, 128
  %710 = vxpose.xlu0.b32.cont [15/16] 0.0, 128
  %711 = vxpose.xlu0.b32.end [16/16] 0.0, 128
  %v712 = vpop.trf.xlu0
  %v713 = vpop.trf.xlu0
  %v714 = vpop.trf.xlu0
  %v715 = vpop.trf.xlu0
  %v716 = vpop.trf.xlu0
  %v717 = vpop.trf.xlu0
  %v718 = vpop.trf.xlu0
  %v719 = vpop.trf.xlu0
  %v720 = vpop.trf.xlu0
  %v721 = vpop.trf.xlu0
  %v722 = vpop.trf.xlu0
  %v723 = vpop.trf.xlu0
  %v724 = vpop.trf.xlu0
  %v725 = vpop.trf.xlu0
  %v726 = vpop.trf.xlu0
  %v727 = vpop.trf.xlu0
  %728 = vxpose.xlu0.b32.start [1/16] %v481, 128
  %729 = vxpose.xlu0.b32.cont [2/16] %v484, 128
  %730 = vxpose.xlu0.b32.cont [3/16] %v487, 128
  %731 = vxpose.xlu0.b32.cont [4/16] %v490, 128
  %732 = vxpose.xlu0.b32.cont [5/16] %v493, 128
  %733 = vxpose.xlu0.b32.cont [6/16] %v496, 128
  %734 = vxpose.xlu0.b32.cont [7/16] %v499, 128
  %735 = vxpose.xlu0.b32.cont [8/16] %v502, 128
  %736 = vxpose.xlu0.b32.cont [9/16] %v505, 128
  %737 = vxpose.xlu0.b32.cont [10/16] %v508, 128
  %738 = vxpose.xlu0.b32.cont [11/16] 0.0, 128
  %739 = vxpose.xlu0.b32.cont [12/16] 0.0, 128
  %740 = vxpose.xlu0.b32.cont [13/16] 0.0, 128
  %741 = vxpose.xlu0.b32.cont [14/16] 0.0, 128
  %742 = vxpose.xlu0.b32.cont [15/16] 0.0, 128
  %743 = vxpose.xlu0.b32.end [16/16] 0.0, 128
  %v744 = vpop.trf.xlu0
  %v745 = vpop.trf.xlu0
  %v746 = vpop.trf.xlu0
  %v747 = vpop.trf.xlu0
  %v748 = vpop.trf.xlu0
  %v749 = vpop.trf.xlu0
  %v750 = vpop.trf.xlu0
  %v751 = vpop.trf.xlu0
  %v752 = vpop.trf.xlu0
  %v753 = vpop.trf.xlu0
  %v754 = vpop.trf.xlu0
  %v755 = vpop.trf.xlu0
  %v756 = vpop.trf.xlu0
  %v757 = vpop.trf.xlu0
  %v758 = vpop.trf.xlu0
  %v759 = vpop.trf.xlu0
  %760 = vxpose.xlu0.b32.start [1/16] %v511, 128
  %761 = vxpose.xlu0.b32.cont [2/16] %v514, 128
  %762 = vxpose.xlu0.b32.cont [3/16] %v517, 128
  %763 = vxpose.xlu0.b32.cont [4/16] %v520, 128
  %764 = vxpose.xlu0.b32.cont [5/16] %v523, 128
  %765 = vxpose.xlu0.b32.cont [6/16] %v526, 128
  %766 = vxpose.xlu0.b32.cont [7/16] %v529, 128
  %767 = vxpose.xlu0.b32.cont [8/16] %v532, 128
  %768 = vxpose.xlu0.b32.cont [9/16] %v535, 128
  %769 = vxpose.xlu0.b32.cont [10/16] %v538, 128
  %770 = vxpose.xlu0.b32.cont [11/16] 0.0, 128
  %771 = vxpose.xlu0.b32.cont [12/16] 0.0, 128
  %772 = vxpose.xlu0.b32.cont [13/16] 0.0, 128
  %773 = vxpose.xlu0.b32.cont [14/16] 0.0, 128
  %774 = vxpose.xlu0.b32.cont [15/16] 0.0, 128
  %775 = vxpose.xlu0.b32.end [16/16] 0.0, 128
  %v776 = vpop.trf.xlu0
  %v777 = vpop.trf.xlu0
  %v778 = vpop.trf.xlu0
  %v779 = vpop.trf.xlu0
  %v780 = vpop.trf.xlu0
  %v781 = vpop.trf.xlu0
  %v782 = vpop.trf.xlu0
  %v783 = vpop.trf.xlu0
  %v784 = vpop.trf.xlu0
  %v785 = vpop.trf.xlu0
  %v786 = vpop.trf.xlu0
  %v787 = vpop.trf.xlu0
  %v788 = vpop.trf.xlu0
  %v789 = vpop.trf.xlu0
  %v790 = vpop.trf.xlu0
  %v791 = vpop.trf.xlu0
  %792 = vxpose.xlu0.b32.start [1/16] %v541, 128
  %793 = vxpose.xlu0.b32.cont [2/16] %v544, 128
  %794 = vxpose.xlu0.b32.cont [3/16] %v547, 128
  %795 = vxpose.xlu0.b32.cont [4/16] %v550, 128
  %796 = vxpose.xlu0.b32.cont [5/16] %v553, 128
  %797 = vxpose.xlu0.b32.cont [6/16] %v556, 128
  %798 = vxpose.xlu0.b32.cont [7/16] %v559, 128
  %799 = vxpose.xlu0.b32.cont [8/16] %v562, 128
  %800 = vxpose.xlu0.b32.cont [9/16] %v565, 128
  %801 = vxpose.xlu0.b32.cont [10/16] %v568, 128
  %802 = vxpose.xlu0.b32.cont [11/16] 0.0, 128
  %803 = vxpose.xlu0.b32.cont [12/16] 0.0, 128
  %804 = vxpose.xlu0.b32.cont [13/16] 0.0, 128
  %805 = vxpose.xlu0.b32.cont [14/16] 0.0, 128
  %806 = vxpose.xlu0.b32.cont [15/16] 0.0, 128
  %807 = vxpose.xlu0.b32.end [16/16] 0.0, 128
  %v808 = vpop.trf.xlu0
  %v809 = vpop.trf.xlu0
  %v810 = vpop.trf.xlu0
  %v811 = vpop.trf.xlu0
  %v812 = vpop.trf.xlu0
  %v813 = vpop.trf.xlu0
  %v814 = vpop.trf.xlu0
  %v815 = vpop.trf.xlu0
  %v816 = vpop.trf.xlu0
  %v817 = vpop.trf.xlu0
  %v818 = vpop.trf.xlu0
  %v819 = vpop.trf.xlu0
  %v820 = vpop.trf.xlu0
  %v821 = vpop.trf.xlu0
  %v822 = vpop.trf.xlu0
  %v823 = vpop.trf.xlu0
  %824 = vxpose.xlu0.b32.start [1/16] %v571, 128
  %825 = vxpose.xlu0.b32.cont [2/16] %v574, 128
  %826 = vxpose.xlu0.b32.cont [3/16] %v577, 128
  %827 = vxpose.xlu0.b32.cont [4/16] %v580, 128
  %828 = vxpose.xlu0.b32.cont [5/16] %v583, 128
  %829 = vxpose.xlu0.b32.cont [6/16] %v586, 128
  %830 = vxpose.xlu0.b32.cont [7/16] %v589, 128
  %831 = vxpose.xlu0.b32.cont [8/16] %v592, 128
  %832 = vxpose.xlu0.b32.cont [9/16] %v595, 128
  %833 = vxpose.xlu0.b32.cont [10/16] %v598, 128
  %834 = vxpose.xlu0.b32.cont [11/16] 0.0, 128
  %835 = vxpose.xlu0.b32.cont [12/16] 0.0, 128
  %836 = vxpose.xlu0.b32.cont [13/16] 0.0, 128
  %837 = vxpose.xlu0.b32.cont [14/16] 0.0, 128
  %838 = vxpose.xlu0.b32.cont [15/16] 0.0, 128
  %839 = vxpose.xlu0.b32.end [16/16] 0.0, 128
  %v840 = vpop.trf.xlu0
  %v841 = vpop.trf.xlu0
  %v842 = vpop.trf.xlu0
  %v843 = vpop.trf.xlu0
  %v844 = vpop.trf.xlu0
  %v845 = vpop.trf.xlu0
  %v846 = vpop.trf.xlu0
  %v847 = vpop.trf.xlu0
  %v848 = vpop.trf.xlu0
  %v849 = vpop.trf.xlu0
  %v850 = vpop.trf.xlu0
  %v851 = vpop.trf.xlu0
  %v852 = vpop.trf.xlu0
  %v853 = vpop.trf.xlu0
  %v854 = vpop.trf.xlu0
  %v855 = vpop.trf.xlu0
  %864 = vrot.lane.b32.xlu0 %v616, 112
  %v865 = vpop.permute.xlu0 %864
  %866 = vrot.lane.b32.xlu0 %v648, 112
  %v867 = vpop.permute.xlu0 %866
  %868 = vrot.lane.b32.xlu0 %v680, 112
  %v869 = vpop.permute.xlu0 %868
  %870 = vrot.lane.b32.xlu0 %v712, 112
  %v871 = vpop.permute.xlu0 %870
  %872 = vrot.lane.b32.xlu0 %v744, 112
  %v873 = vpop.permute.xlu0 %872
  %874 = vrot.lane.b32.xlu0 %v776, 112
  %v875 = vpop.permute.xlu0 %874
  %876 = vrot.lane.b32.xlu0 %v808, 112
  %v877 = vpop.permute.xlu0 %876
  %878 = vrot.lane.b32.xlu0 %v840, 112
  %v879 = vpop.permute.xlu0 %878
  %vm888 = vcmask 517120
  %889 = vst.msk [vmem:[%s3] sm:$0x3] %vm888, %v865
  %890 = vst.msk [vmem:[%s3 + $0x2] sm:$0x3] %vm888, %v867
  %891 = vst.msk [vmem:[%s3 + $0x4] sm:$0x3] %vm888, %v869
  %892 = vst.msk [vmem:[%s3 + $0x6] sm:$0x3] %vm888, %v871
  %893 = vst.msk [vmem:[%s3 + $0x8] sm:$0x3] %vm888, %v873
  %894 = vst.msk [vmem:[%s3 + $0xa] sm:$0x3] %vm888, %v875
  %895 = vst.msk [vmem:[%s3 + $0xc] sm:$0x3] %vm888, %v877
  %896 = vst.msk [vmem:[%s3 + $0xe] sm:$0x3] %vm888, %v879
  %vm897 = vcmask 651266
  %v898 = vsel %vm897, %v616, -inf
  %899 = vmax.xlane.f32.xlu0 %v898
  %v900 = vpop.xlane.xlu0 %899
  %v901 = vsel %vm897, %v648, -inf
  %902 = vmax.xlane.f32.xlu0 %v901
  %v903 = vpop.xlane.xlu0 %902
  %v904 = vsel %vm897, %v680, -inf
  %905 = vmax.xlane.f32.xlu0 %v904
  %v906 = vpop.xlane.xlu0 %905
  %v907 = vsel %vm897, %v712, -inf
  %908 = vmax.xlane.f32.xlu0 %v907
  %v909 = vpop.xlane.xlu0 %908
  %v910 = vsel %vm897, %v744, -inf
  %911 = vmax.xlane.f32.xlu0 %v910
  %v912 = vpop.xlane.xlu0 %911
  %v913 = vsel %vm897, %v776, -inf
  %914 = vmax.xlane.f32.xlu0 %v913
  %v915 = vpop.xlane.xlu0 %914
  %v916 = vsel %vm897, %v808, -inf
  %917 = vmax.xlane.f32.xlu0 %v916
  %v918 = vpop.xlane.xlu0 %917
  %v919 = vsel %vm897, %v840, -inf
  %920 = vmax.xlane.f32.xlu0 %v919
  %v921 = vpop.xlane.xlu0 %920
  %v922 = vsub.f32 %v616, %v900
  %v923 = vsub.f32 %v648, %v903
  %v924 = vsub.f32 %v680, %v906
  %v925 = vsub.f32 %v712, %v909
  %v926 = vsub.f32 %v744, %v912
  %v927 = vsub.f32 %v776, %v915
  %v928 = vsub.f32 %v808, %v918
  %v929 = vsub.f32 %v840, %v921
  %v930 = vmul.f32 %v922, 1.442695
  %v931 = vpow.pop %v930
  %v932 = vmul.f32 %v923, 1.442695
  %v933 = vpow.pop %v932
  %v934 = vmul.f32 %v924, 1.442695
  %v935 = vpow.pop %v934
  %v936 = vmul.f32 %v925, 1.442695
  %v937 = vpow.pop %v936
  %v938 = vmul.f32 %v926, 1.442695
  %v939 = vpow.pop %v938
  %v940 = vmul.f32 %v927, 1.442695
  %v941 = vpow.pop %v940
  %v942 = vmul.f32 %v928, 1.442695
  %v943 = vpow.pop %v942
  %v944 = vmul.f32 %v929, 1.442695
  %v945 = vpow.pop %v944
  %v946 = vsel %vm897, %v931, 0.0
  %947 = vadd.xlane.f32.xlu0 %v946
  %v948 = vpop.xlane.xlu0 %947
  %v949 = vsel %vm897, %v933, 0.0
  %950 = vadd.xlane.f32.xlu0 %v949
  %v951 = vpop.xlane.xlu0 %950
  %v952 = vsel %vm897, %v935, 0.0
  %953 = vadd.xlane.f32.xlu0 %v952
  %v954 = vpop.xlane.xlu0 %953
  %v955 = vsel %vm897, %v937, 0.0
  %956 = vadd.xlane.f32.xlu0 %v955
  %v957 = vpop.xlane.xlu0 %956
  %v958 = vsel %vm897, %v939, 0.0
  %959 = vadd.xlane.f32.xlu0 %v958
  %v960 = vpop.xlane.xlu0 %959
  %v961 = vsel %vm897, %v941, 0.0
  %962 = vadd.xlane.f32.xlu0 %v961
  %v963 = vpop.xlane.xlu0 %962
  %v964 = vsel %vm897, %v943, 0.0
  %965 = vadd.xlane.f32.xlu0 %v964
  %v966 = vpop.xlane.xlu0 %965
  %v967 = vsel %vm897, %v945, 0.0
  %968 = vadd.xlane.f32.xlu0 %v967
  %v969 = vpop.xlane.xlu0 %968
  %v970 = vrcp.pop %v948
  %v971 = vrcp.pop %v951
  %v972 = vrcp.pop %v954
  %v973 = vrcp.pop %v957
  %v974 = vrcp.pop %v960
  %v975 = vrcp.pop %v963
  %v976 = vrcp.pop %v966
  %v977 = vrcp.pop %v969
  %v978 = vmul.f32 %v931, %v970
  %v979 = vmul.f32 %v933, %v971
  %v980 = vmul.f32 %v935, %v972
  %v981 = vmul.f32 %v937, %v973
  %v982 = vmul.f32 %v939, %v974
  %v983 = vmul.f32 %v941, %v975
  %v984 = vmul.f32 %v943, %v976
  %v985 = vmul.f32 %v945, %v977
  %v986 = vld [vmem:[%s0] sm:$0xff]
  %v987 = vld [vmem:[%s0 + $0x8] sm:$0xff]
  %v988 = vld [vmem:[%s0 + $0x10] sm:$0xff]
  %v989 = vld [vmem:[%s0 + $0x18] sm:$0xff]
  %v990 = vld [vmem:[%s0 + $0x20] sm:$0xff]
  %v991 = vld [vmem:[%s0 + $0x28] sm:$0xff]
  %v992 = vld [vmem:[%s0 + $0x30] sm:$0xff]
  %v993 = vld [vmem:[%s0 + $0x38] sm:$0xff]
  %v994 = vld [vmem:[%s0 + $0x40] sm:$0xff]
  %v995 = vld [vmem:[%s0 + $0x48] sm:$0xff]
  %v996 = vld [vmem:[%s0 + $0x50] sm:$0xff]
  %v997 = vld [vmem:[%s0 + $0x58] sm:$0xff]
  %v998 = vld [vmem:[%s0 + $0x60] sm:$0xff]
  %v999 = vld [vmem:[%s0 + $0x68] sm:$0xff]
  %v1000 = vld [vmem:[%s0 + $0x70] sm:$0xff]
  %v1001 = vld [vmem:[%s0 + $0x78] sm:$0xff]
  %v1002 = vld [vmem:[%s0 + $0x80] sm:$0xff]
  %v1003 = vld [vmem:[%s0 + $0x88] sm:$0xff]
  %v1004 = vld [vmem:[%s0 + $0x90] sm:$0xff]
  %v1005 = vld [vmem:[%s0 + $0x98] sm:$0xff]
  %v1006 = vld [vmem:[%s0 + $0xa0] sm:$0xff]
  %v1007 = vld [vmem:[%s0 + $0xa8] sm:$0xff]
  %v1008 = vld [vmem:[%s0 + $0xb0] sm:$0xff]
  %v1009 = vld [vmem:[%s0 + $0xb8] sm:$0xff]
  %v1010 = vld [vmem:[%s0 + $0xc0] sm:$0xff]
  %v1011 = vld [vmem:[%s0 + $0xc8] sm:$0xff]
  %v1012 = vld [vmem:[%s0 + $0xd0] sm:$0xff]
  %v1013 = vld [vmem:[%s0 + $0xd8] sm:$0xff]
  %v1014 = vld [vmem:[%s0 + $0xe0] sm:$0xff]
  %v1015 = vld [vmem:[%s0 + $0xe8] sm:$0xff]
  %v1016 = vld [vmem:[%s0 + $0xf0] sm:$0xff]
  %v1017 = vld [vmem:[%s0 + $0xf8] sm:$0xff]
  %v1018 = vld [vmem:[%s0 + $0x100] sm:$0xff]
  %v1019 = vld [vmem:[%s0 + $0x108] sm:$0xff]
  %v1020 = vld [vmem:[%s0 + $0x110] sm:$0xff]
  %v1021 = vld [vmem:[%s0 + $0x118] sm:$0xff]
  %v1022 = vld [vmem:[%s0 + $0x120] sm:$0xff]
  %v1023 = vld [vmem:[%s0 + $0x128] sm:$0xff]
  %v1024 = vld [vmem:[%s0 + $0x130] sm:$0xff]
  %v1025 = vld [vmem:[%s0 + $0x138] sm:$0xff]
  %v1026 = vld [vmem:[%s0 + $0x140] sm:$0xff]
  %v1027 = vld [vmem:[%s0 + $0x148] sm:$0xff]
  %v1028 = vld [vmem:[%s0 + $0x150] sm:$0xff]
  %v1029 = vld [vmem:[%s0 + $0x158] sm:$0xff]
  %v1030 = vld [vmem:[%s0 + $0x160] sm:$0xff]
  %v1031 = vld [vmem:[%s0 + $0x168] sm:$0xff]
  %v1032 = vld [vmem:[%s0 + $0x170] sm:$0xff]
  %v1033 = vld [vmem:[%s0 + $0x178] sm:$0xff]
  %v1034 = vld [vmem:[%s0 + $0x180] sm:$0xff]
  %v1035 = vld [vmem:[%s0 + $0x188] sm:$0xff]
  %v1036 = vld [vmem:[%s0 + $0x190] sm:$0xff]
  %v1037 = vld [vmem:[%s0 + $0x198] sm:$0xff]
  %v1038 = vld [vmem:[%s0 + $0x1a0] sm:$0xff]
  %v1039 = vld [vmem:[%s0 + $0x1a8] sm:$0xff]
  %v1040 = vld [vmem:[%s0 + $0x1b0] sm:$0xff]
  %v1041 = vld [vmem:[%s0 + $0x1b8] sm:$0xff]
  %v1042 = vld [vmem:[%s0 + $0x1c0] sm:$0xff]
  %v1043 = vld [vmem:[%s0 + $0x1c8] sm:$0xff]
  %v1044 = vld [vmem:[%s0 + $0x1d0] sm:$0xff]
  %v1045 = vld [vmem:[%s0 + $0x1d8] sm:$0xff]
  %v1046 = vld [vmem:[%s0 + $0x1e0] sm:$0xff]
  %v1047 = vld [vmem:[%s0 + $0x1e8] sm:$0xff]
  %v1048 = vld [vmem:[%s0 + $0x1f0] sm:$0xff]
  %v1049 = vld [vmem:[%s0 + $0x1f8] sm:$0xff]
  %v1050 = vld [vmem:[%s0 + $0x200] sm:$0xff]
  %v1051 = vld [vmem:[%s0 + $0x208] sm:$0xff]
  %v1052 = vld [vmem:[%s0 + $0x210] sm:$0xff]
  %v1053 = vld [vmem:[%s0 + $0x218] sm:$0xff]
  %v1054 = vld [vmem:[%s0 + $0x220] sm:$0xff]
  %v1055 = vld [vmem:[%s0 + $0x228] sm:$0xff]
  %v1056 = vld [vmem:[%s0 + $0x230] sm:$0xff]
  %v1057 = vld [vmem:[%s0 + $0x238] sm:$0xff]
  %v1058 = vld [vmem:[%s0 + $0x240] sm:$0xff]
  %v1059 = vld [vmem:[%s0 + $0x248] sm:$0xff]
  %v1060 = vld [vmem:[%s0 + $0x250] sm:$0xff]
  %v1061 = vld [vmem:[%s0 + $0x258] sm:$0xff]
  %v1062 = vld [vmem:[%s0 + $0x260] sm:$0xff]
  %v1063 = vld [vmem:[%s0 + $0x268] sm:$0xff]
  %v1064 = vld [vmem:[%s0 + $0x270] sm:$0xff]
  %v1065 = vld [vmem:[%s0 + $0x278] sm:$0xff]
  %v1067 = vrot.slane %v978, 2
  %vm1068 = vcmask 654336
  %v1069 = vsel %vm1068, %v1067, 0
  %1071 = vmatpush.msra.mxu0 0.0
  %1072 = vmatpush.msra.mxu0 0.0
  %1073 = vmatpush.msra.mxu0 0.0
  %1074 = vmatpush.msra.mxu0 0.0
  %1075 = vmatpush.msra.mxu0 0.0
  %1076 = vmatpush.msra.mxu0 0.0
  %1077 = vmatpush.msra.mxu0 %v995
  %1078 = vmatpush.msra.mxu0 %v994
  %1079 = vmatpush.msra.mxu0 %v993
  %1080 = vmatpush.msra.mxu0 %v992
  %1081 = vmatpush.msra.mxu0 %v991
  %1082 = vmatpush.msra.mxu0 %v990
  %1083 = vmatpush.msra.mxu0 %v989
  %1084 = vmatpush.msra.mxu0 %v988
  %1085 = vmatpush.msra.mxu0 %v987
  %1086 = vmatpush.msra.mxu0 %v986
  %1087 = vmatmul.f32.gmra.mxu0 %v1069
  %v1088 = vpop.f32.mrf.mxu0
  %v1089 = vadd.f32 0.0, %v1088
  %1090 = vdwg.mxu0
  %v1092 = vrot.slane %v979, 2
  %v1093 = vsel %vm1068, %v1092, 0
  %1095 = vmatpush.msra.mxu0 0.0
  %1096 = vmatpush.msra.mxu0 0.0
  %1097 = vmatpush.msra.mxu0 0.0
  %1098 = vmatpush.msra.mxu0 0.0
  %1099 = vmatpush.msra.mxu0 0.0
  %1100 = vmatpush.msra.mxu0 0.0
  %1101 = vmatpush.msra.mxu0 %v1005
  %1102 = vmatpush.msra.mxu0 %v1004
  %1103 = vmatpush.msra.mxu0 %v1003
  %1104 = vmatpush.msra.mxu0 %v1002
  %1105 = vmatpush.msra.mxu0 %v1001
  %1106 = vmatpush.msra.mxu0 %v1000
  %1107 = vmatpush.msra.mxu0 %v999
  %1108 = vmatpush.msra.mxu0 %v998
  %1109 = vmatpush.msra.mxu0 %v997
  %1110 = vmatpush.msra.mxu0 %v996
  %1111 = vmatmul.f32.gmra.mxu0 %v1093
  %v1112 = vpop.f32.mrf.mxu0
  %v1113 = vadd.f32 0.0, %v1112
  %1114 = vdwg.mxu0
  %v1116 = vrot.slane %v980, 2
  %v1117 = vsel %vm1068, %v1116, 0
  %1119 = vmatpush.msra.mxu0 0.0
  %1120 = vmatpush.msra.mxu0 0.0
  %1121 = vmatpush.msra.mxu0 0.0
  %1122 = vmatpush.msra.mxu0 0.0
  %1123 = vmatpush.msra.mxu0 0.0
  %1124 = vmatpush.msra.mxu0 0.0
  %1125 = vmatpush.msra.mxu0 %v1015
  %1126 = vmatpush.msra.mxu0 %v1014
  %1127 = vmatpush.msra.mxu0 %v1013
  %1128 = vmatpush.msra.mxu0 %v1012
  %1129 = vmatpush.msra.mxu0 %v1011
  %1130 = vmatpush.msra.mxu0 %v1010
  %1131 = vmatpush.msra.mxu0 %v1009
  %1132 = vmatpush.msra.mxu0 %v1008
  %1133 = vmatpush.msra.mxu0 %v1007
  %1134 = vmatpush.msra.mxu0 %v1006
  %1135 = vmatmul.f32.gmra.mxu0 %v1117
  %v1136 = vpop.f32.mrf.mxu0
  %v1137 = vadd.f32 0.0, %v1136
  %1138 = vdwg.mxu0
  %v1140 = vrot.slane %v981, 2
  %v1141 = vsel %vm1068, %v1140, 0
  %1143 = vmatpush.msra.mxu0 0.0
  %1144 = vmatpush.msra.mxu0 0.0
  %1145 = vmatpush.msra.mxu0 0.0
  %1146 = vmatpush.msra.mxu0 0.0
  %1147 = vmatpush.msra.mxu0 0.0
  %1148 = vmatpush.msra.mxu0 0.0
  %1149 = vmatpush.msra.mxu0 %v1025
  %1150 = vmatpush.msra.mxu0 %v1024
  %1151 = vmatpush.msra.mxu0 %v1023
  %1152 = vmatpush.msra.mxu0 %v1022
  %1153 = vmatpush.msra.mxu0 %v1021
  %1154 = vmatpush.msra.mxu0 %v1020
  %1155 = vmatpush.msra.mxu0 %v1019
  %1156 = vmatpush.msra.mxu0 %v1018
  %1157 = vmatpush.msra.mxu0 %v1017
  %1158 = vmatpush.msra.mxu0 %v1016
  %1159 = vmatmul.f32.gmra.mxu0 %v1141
  %v1160 = vpop.f32.mrf.mxu0
  %v1161 = vadd.f32 0.0, %v1160
  %1162 = vdwg.mxu0
  %v1164 = vrot.slane %v982, 2
  %v1165 = vsel %vm1068, %v1164, 0
  %1167 = vmatpush.msra.mxu0 0.0
  %1168 = vmatpush.msra.mxu0 0.0
  %1169 = vmatpush.msra.mxu0 0.0
  %1170 = vmatpush.msra.mxu0 0.0
  %1171 = vmatpush.msra.mxu0 0.0
  %1172 = vmatpush.msra.mxu0 0.0
  %1173 = vmatpush.msra.mxu0 %v1035
  %1174 = vmatpush.msra.mxu0 %v1034
  %1175 = vmatpush.msra.mxu0 %v1033
  %1176 = vmatpush.msra.mxu0 %v1032
  %1177 = vmatpush.msra.mxu0 %v1031
  %1178 = vmatpush.msra.mxu0 %v1030
  %1179 = vmatpush.msra.mxu0 %v1029
  %1180 = vmatpush.msra.mxu0 %v1028
  %1181 = vmatpush.msra.mxu0 %v1027
  %1182 = vmatpush.msra.mxu0 %v1026
  %1183 = vmatmul.f32.gmra.mxu0 %v1165
  %v1184 = vpop.f32.mrf.mxu0
  %v1185 = vadd.f32 0.0, %v1184
  %1186 = vdwg.mxu0
  %v1188 = vrot.slane %v983, 2
  %v1189 = vsel %vm1068, %v1188, 0
  %1191 = vmatpush.msra.mxu0 0.0
  %1192 = vmatpush.msra.mxu0 0.0
  %1193 = vmatpush.msra.mxu0 0.0
  %1194 = vmatpush.msra.mxu0 0.0
  %1195 = vmatpush.msra.mxu0 0.0
  %1196 = vmatpush.msra.mxu0 0.0
  %1197 = vmatpush.msra.mxu0 %v1045
  %1198 = vmatpush.msra.mxu0 %v1044
  %1199 = vmatpush.msra.mxu0 %v1043
  %1200 = vmatpush.msra.mxu0 %v1042
  %1201 = vmatpush.msra.mxu0 %v1041
  %1202 = vmatpush.msra.mxu0 %v1040
  %1203 = vmatpush.msra.mxu0 %v1039
  %1204 = vmatpush.msra.mxu0 %v1038
  %1205 = vmatpush.msra.mxu0 %v1037
  %1206 = vmatpush.msra.mxu0 %v1036
  %1207 = vmatmul.f32.gmra.mxu0 %v1189
  %v1208 = vpop.f32.mrf.mxu0
  %v1209 = vadd.f32 0.0, %v1208
  %1210 = vdwg.mxu0
  %v1212 = vrot.slane %v984, 2
  %v1213 = vsel %vm1068, %v1212, 0
  %1215 = vmatpush.msra.mxu0 0.0
  %1216 = vmatpush.msra.mxu0 0.0
  %1217 = vmatpush.msra.mxu0 0.0
  %1218 = vmatpush.msra.mxu0 0.0
  %1219 = vmatpush.msra.mxu0 0.0
  %1220 = vmatpush.msra.mxu0 0.0
  %1221 = vmatpush.msra.mxu0 %v1055
  %1222 = vmatpush.msra.mxu0 %v1054
  %1223 = vmatpush.msra.mxu0 %v1053
  %1224 = vmatpush.msra.mxu0 %v1052
  %1225 = vmatpush.msra.mxu0 %v1051
  %1226 = vmatpush.msra.mxu0 %v1050
  %1227 = vmatpush.msra.mxu0 %v1049
  %1228 = vmatpush.msra.mxu0 %v1048
  %1229 = vmatpush.msra.mxu0 %v1047
  %1230 = vmatpush.msra.mxu0 %v1046
  %1231 = vmatmul.f32.gmra.mxu0 %v1213
  %v1232 = vpop.f32.mrf.mxu0
  %v1233 = vadd.f32 0.0, %v1232
  %1234 = vdwg.mxu0
  %v1236 = vrot.slane %v985, 2
  %v1237 = vsel %vm1068, %v1236, 0
  %1239 = vmatpush.msra.mxu0 0.0
  %1240 = vmatpush.msra.mxu0 0.0
  %1241 = vmatpush.msra.mxu0 0.0
  %1242 = vmatpush.msra.mxu0 0.0
  %1243 = vmatpush.msra.mxu0 0.0
  %1244 = vmatpush.msra.mxu0 0.0
  %1245 = vmatpush.msra.mxu0 %v1065
  %1246 = vmatpush.msra.mxu0 %v1064
  %1247 = vmatpush.msra.mxu0 %v1063
  %1248 = vmatpush.msra.mxu0 %v1062
  %1249 = vmatpush.msra.mxu0 %v1061
  %1250 = vmatpush.msra.mxu0 %v1060
  %1251 = vmatpush.msra.mxu0 %v1059
  %1252 = vmatpush.msra.mxu0 %v1058
  %1253 = vmatpush.msra.mxu0 %v1057
  %1254 = vmatpush.msra.mxu0 %v1056
  %1255 = vmatmul.f32.gmra.mxu0 %v1237
  %v1256 = vpop.f32.mrf.mxu0
  %v1257 = vadd.f32 0.0, %v1256
  %1258 = vdwg.mxu0
  %v1259 = vrot.slane %v1137, 4
  %vm1260 = vcmask 1047556
  %v1261 = vsel %vm1260, %v1259, %v1089
  %v1263 = vunpack.c.l.s4 1983009808
  %v1264 = vunpack.c.0.s8 %v1263
  %v1265 = vperm.slane %v1261, %v1264
  %v1266 = vrot.slane %v1161, 4
  %v1267 = vsel %vm1260, %v1266, %v1113
  %v1269 = vunpack.c.l.s4 1983009808
  %v1270 = vunpack.c.0.s8 %v1269
  %v1271 = vperm.slane %v1267, %v1270
  %v1272 = vrot.slane %v1233, 4
  %v1273 = vsel %vm1260, %v1272, %v1185
  %v1275 = vunpack.c.l.s4 1983009808
  %v1276 = vunpack.c.0.s8 %v1275
  %v1277 = vperm.slane %v1273, %v1276
  %v1278 = vrot.slane %v1257, 4
  %v1279 = vsel %vm1260, %v1278, %v1209
  %v1281 = vunpack.c.l.s4 1983009808
  %v1282 = vunpack.c.0.s8 %v1281
  %v1283 = vperm.slane %v1279, %v1282
  %v1284 = vrot.slane %v1271, 4
  %v1285 = vsel %vm1260, %v1284, %v1265
  %v1286 = vrot.slane %v1265, 4
  %v1287 = vsel %vm1260, %v1271, %v1286
  %v1289 = vunpack.c.l.s4 1934713408
  %v1290 = vunpack.c.0.s8 %v1289
  %v1291 = vperm.slane %v1285, %v1290
  %v1293 = vunpack.c.l.s4 1934713408
  %v1294 = vunpack.c.0.s8 %v1293
  %v1295 = vperm.slane %v1287, %v1294
  %v1296 = vrot.slane %v1283, 4
  %v1297 = vsel %vm1260, %v1296, %v1277
  %v1298 = vrot.slane %v1277, 4
  %v1299 = vsel %vm1260, %v1283, %v1298
  %v1301 = vunpack.c.l.s4 1934713408
  %v1302 = vunpack.c.0.s8 %v1301
  %v1303 = vperm.slane %v1297, %v1302
  %v1305 = vunpack.c.l.s4 1934713408
  %v1306 = vunpack.c.0.s8 %v1305
  %v1307 = vperm.slane %v1299, %v1306
  %v1308 = vrot.slane %v1303, 4
  %v1309 = vsel %vm1260, %v1308, %v1291
  %v1310 = vrot.slane %v1291, 4
  %v1311 = vsel %vm1260, %v1303, %v1310
  %v1312 = vrot.slane %v1307, 4
  %v1313 = vsel %vm1260, %v1312, %v1295
  %v1314 = vld [vmem:[%s2 + $0xa0] sm:$0xff]
  %v1315 = vld [vmem:[%s2 + $0xa8] sm:$0xff]
  %v1316 = vld [vmem:[%s2 + $0x150] sm:$0xff]
  %v1317 = vld [vmem:[%s2 + $0x158] sm:$0xff]
  %v1318 = vld [vmem:[%s2 + $0x200] sm:$0xff]
  %v1319 = vld [vmem:[%s2 + $0x208] sm:$0xff]
  %v1320 = vld [vmem:[%s2] sm:$0xff]
  %v1321 = vld [vmem:[%s2 + $0x8] sm:$0xff]
  %v1322 = vld [vmem:[%s2 + $0x10] sm:$0xff]
  %v1323 = vld [vmem:[%s2 + $0x18] sm:$0xff]
  %v1324 = vld [vmem:[%s2 + $0xb0] sm:$0xff]
  %v1325 = vld [vmem:[%s2 + $0xb8] sm:$0xff]
  %v1326 = vld [vmem:[%s2 + $0xc0] sm:$0xff]
  %v1327 = vld [vmem:[%s2 + $0xc8] sm:$0xff]
  %v1328 = vld [vmem:[%s2 + $0x160] sm:$0xff]
  %v1329 = vld [vmem:[%s2 + $0x168] sm:$0xff]
  %v1330 = vld [vmem:[%s2 + $0x170] sm:$0xff]
  %v1331 = vld [vmem:[%s2 + $0x178] sm:$0xff]
  %v1332 = vperm.slane %v1314, 0
  %v1333 = vperm.slane %v1316, 0
  %v1334 = vperm.slane %v1318, 0
  %v1336 = vsel %vm102, %v1309, 0
  %1338 = vmatpush.msra.mxu0 0.0
  %1339 = vmatpush.msra.mxu0 0.0
  %1340 = vmatpush.msra.mxu0 0.0
  %1341 = vmatpush.msra.mxu0 0.0
  %1342 = vmatpush.msra.mxu0 0.0
  %1343 = vmatpush.msra.mxu0 0.0
  %1344 = vmatpush.msra.mxu0 0.0
  %1345 = vmatpush.msra.mxu0 0.0
  %1346 = vmatpush.msra.mxu0 0.0
  %1347 = vmatpush.msra.mxu0 0.0
  %1348 = vmatpush.msra.mxu0 0.0
  %1349 = vmatpush.msra.mxu0 0.0
  %1350 = vmatpush.msra.mxu0 %v1323
  %1351 = vmatpush.msra.mxu0 %v1322
  %1352 = vmatpush.msra.mxu0 %v1321
  %1353 = vmatpush.msra.mxu0 %v1320
  %1354 = vmatmul.f32.gmra.mxu0 %v1336
  %v1355 = vpop.f32.mrf.mxu0
  %v1356 = vadd.f32 %v1332, %v1355
  %1357 = vdwg.mxu0
  %v1359 = vsel %vm102, %v1311, 0
  %1361 = vmatpush.msra.mxu0 0.0
  %1362 = vmatpush.msra.mxu0 0.0
  %1363 = vmatpush.msra.mxu0 0.0
  %1364 = vmatpush.msra.mxu0 0.0
  %1365 = vmatpush.msra.mxu0 0.0
  %1366 = vmatpush.msra.mxu0 0.0
  %1367 = vmatpush.msra.mxu0 0.0
  %1368 = vmatpush.msra.mxu0 0.0
  %1369 = vmatpush.msra.mxu0 0.0
  %1370 = vmatpush.msra.mxu0 0.0
  %1371 = vmatpush.msra.mxu0 0.0
  %1372 = vmatpush.msra.mxu0 0.0
  %1373 = vmatpush.msra.mxu0 %v1327
  %1374 = vmatpush.msra.mxu0 %v1326
  %1375 = vmatpush.msra.mxu0 %v1325
  %1376 = vmatpush.msra.mxu0 %v1324
  %1377 = vmatmul.f32.gmra.mxu0 %v1359
  %v1378 = vpop.f32.mrf.mxu0
  %v1379 = vadd.f32 %v1333, %v1378
  %1380 = vdwg.mxu0
  %v1382 = vsel %vm102, %v1313, 0
  %1384 = vmatpush.msra.mxu0 0.0
  %1385 = vmatpush.msra.mxu0 0.0
  %1386 = vmatpush.msra.mxu0 0.0
  %1387 = vmatpush.msra.mxu0 0.0
  %1388 = vmatpush.msra.mxu0 0.0
  %1389 = vmatpush.msra.mxu0 0.0
  %1390 = vmatpush.msra.mxu0 0.0
  %1391 = vmatpush.msra.mxu0 0.0
  %1392 = vmatpush.msra.mxu0 0.0
  %1393 = vmatpush.msra.mxu0 0.0
  %1394 = vmatpush.msra.mxu0 0.0
  %1395 = vmatpush.msra.mxu0 0.0
  %1396 = vmatpush.msra.mxu0 %v1331
  %1397 = vmatpush.msra.mxu0 %v1330
  %1398 = vmatpush.msra.mxu0 %v1329
  %1399 = vmatpush.msra.mxu0 %v1328
  %1400 = vmatmul.f32.gmra.mxu0 %v1382
  %v1401 = vpop.f32.mrf.mxu0
  %v1402 = vadd.f32 %v1334, %v1401
  %1403 = vdwg.mxu0
  %v1404 = vmax.f32 %v1356, 0.0
  %v1405 = vmax.f32 %v1379, 0.0
  %v1406 = vmax.f32 %v1402, 0.0
  %v1407 = vld [vmem:[%s2 + $0x20] sm:$0xff]
  %v1408 = vld [vmem:[%s2 + $0x28] sm:$0xff]
  %v1409 = vld [vmem:[%s2 + $0xd0] sm:$0xff]
  %v1410 = vld [vmem:[%s2 + $0xd8] sm:$0xff]
  %v1411 = vld [vmem:[%s2 + $0x180] sm:$0xff]
  %v1412 = vld [vmem:[%s2 + $0x188] sm:$0xff]
  %v1413 = vld [vmem:[%s2 + $0x30] sm:$0xff]
  %v1414 = vld [vmem:[%s2 + $0x38] sm:$0xff]
  %v1415 = vld [vmem:[%s2 + $0xe0] sm:$0xff]
  %v1416 = vld [vmem:[%s2 + $0xe8] sm:$0xff]
  %v1417 = vld [vmem:[%s2 + $0x190] sm:$0xff]
  %v1418 = vld [vmem:[%s2 + $0x198] sm:$0xff]
  %v1419 = vperm.slane %v1314, 1
  %v1420 = vperm.slane %v1316, 1
  %v1421 = vperm.slane %v1318, 1
  %vm1422 = vcmask 130048
  %v1424 = vsel %vm1422, %v1404, 0
  %1426 = vmatpush.msra.mxu0 0.0
  %1427 = vmatpush.msra.mxu0 0.0
  %1428 = vmatpush.msra.mxu0 0.0
  %1429 = vmatpush.msra.mxu0 0.0
  %1430 = vmatpush.msra.mxu0 0.0
  %1431 = vmatpush.msra.mxu0 0.0
  %1432 = vmatpush.msra.mxu0 0.0
  %1433 = vmatpush.msra.mxu0 0.0
  %1434 = vmatpush.msra.mxu0 0.0
  %1435 = vmatpush.msra.mxu0 0.0
  %1436 = vmatpush.msra.mxu0 0.0
  %1437 = vmatpush.msra.mxu0 0.0
  %1438 = vmatpush.msra.mxu0 0.0
  %1439 = vmatpush.msra.mxu0 0.0
  %1440 = vmatpush.msra.mxu0 %v1408
  %1441 = vmatpush.msra.mxu0 %v1407
  %1442 = vmatmul.f32.gmra.mxu0 %v1424
  %v1443 = vpop.f32.mrf.mxu0
  %v1444 = vadd.f32 %v1419, %v1443
  %1445 = vdwg.mxu0
  %v1447 = vsel %vm1422, %v1405, 0
  %1449 = vmatpush.msra.mxu0 0.0
  %1450 = vmatpush.msra.mxu0 0.0
  %1451 = vmatpush.msra.mxu0 0.0
  %1452 = vmatpush.msra.mxu0 0.0
  %1453 = vmatpush.msra.mxu0 0.0
  %1454 = vmatpush.msra.mxu0 0.0
  %1455 = vmatpush.msra.mxu0 0.0
  %1456 = vmatpush.msra.mxu0 0.0
  %1457 = vmatpush.msra.mxu0 0.0
  %1458 = vmatpush.msra.mxu0 0.0
  %1459 = vmatpush.msra.mxu0 0.0
  %1460 = vmatpush.msra.mxu0 0.0
  %1461 = vmatpush.msra.mxu0 0.0
  %1462 = vmatpush.msra.mxu0 0.0
  %1463 = vmatpush.msra.mxu0 %v1410
  %1464 = vmatpush.msra.mxu0 %v1409
  %1465 = vmatmul.f32.gmra.mxu0 %v1447
  %v1466 = vpop.f32.mrf.mxu0
  %v1467 = vadd.f32 %v1420, %v1466
  %1468 = vdwg.mxu0
  %v1470 = vsel %vm1422, %v1406, 0
  %1472 = vmatpush.msra.mxu0 0.0
  %1473 = vmatpush.msra.mxu0 0.0
  %1474 = vmatpush.msra.mxu0 0.0
  %1475 = vmatpush.msra.mxu0 0.0
  %1476 = vmatpush.msra.mxu0 0.0
  %1477 = vmatpush.msra.mxu0 0.0
  %1478 = vmatpush.msra.mxu0 0.0
  %1479 = vmatpush.msra.mxu0 0.0
  %1480 = vmatpush.msra.mxu0 0.0
  %1481 = vmatpush.msra.mxu0 0.0
  %1482 = vmatpush.msra.mxu0 0.0
  %1483 = vmatpush.msra.mxu0 0.0
  %1484 = vmatpush.msra.mxu0 0.0
  %1485 = vmatpush.msra.mxu0 0.0
  %1486 = vmatpush.msra.mxu0 %v1412
  %1487 = vmatpush.msra.mxu0 %v1411
  %1488 = vmatmul.f32.gmra.mxu0 %v1470
  %v1489 = vpop.f32.mrf.mxu0
  %v1490 = vadd.f32 %v1421, %v1489
  %1491 = vdwg.mxu0
  %v1492 = vmax.f32 %v1444, 0.0
  %v1493 = vmax.f32 %v1467, 0.0
  %v1494 = vmax.f32 %v1490, 0.0
  %v1495 = vperm.slane %v1314, 2
  %v1496 = vperm.slane %v1316, 2
  %v1497 = vperm.slane %v1318, 2
  %v1499 = vsel %vm1422, %v1492, 0
  %1501 = vmatpush.msra.mxu0 0.0
  %1502 = vmatpush.msra.mxu0 0.0
  %1503 = vmatpush.msra.mxu0 0.0
  %1504 = vmatpush.msra.mxu0 0.0
  %1505 = vmatpush.msra.mxu0 0.0
  %1506 = vmatpush.msra.mxu0 0.0
  %1507 = vmatpush.msra.mxu0 0.0
  %1508 = vmatpush.msra.mxu0 0.0
  %1509 = vmatpush.msra.mxu0 0.0
  %1510 = vmatpush.msra.mxu0 0.0
  %1511 = vmatpush.msra.mxu0 0.0
  %1512 = vmatpush.msra.mxu0 0.0
  %1513 = vmatpush.msra.mxu0 0.0
  %1514 = vmatpush.msra.mxu0 0.0
  %1515 = vmatpush.msra.mxu0 %v1414
  %1516 = vmatpush.msra.mxu0 %v1413
  %1517 = vmatmul.f32.gmra.mxu0 %v1499
  %v1518 = vpop.f32.mrf.mxu0
  %v1519 = vadd.f32 %v1495, %v1518
  %1520 = vdwg.mxu0
  %v1522 = vsel %vm1422, %v1493, 0
  %1524 = vmatpush.msra.mxu0 0.0
  %1525 = vmatpush.msra.mxu0 0.0
  %1526 = vmatpush.msra.mxu0 0.0
  %1527 = vmatpush.msra.mxu0 0.0
  %1528 = vmatpush.msra.mxu0 0.0
  %1529 = vmatpush.msra.mxu0 0.0
  %1530 = vmatpush.msra.mxu0 0.0
  %1531 = vmatpush.msra.mxu0 0.0
  %1532 = vmatpush.msra.mxu0 0.0
  %1533 = vmatpush.msra.mxu0 0.0
  %1534 = vmatpush.msra.mxu0 0.0
  %1535 = vmatpush.msra.mxu0 0.0
  %1536 = vmatpush.msra.mxu0 0.0
  %1537 = vmatpush.msra.mxu0 0.0
  %1538 = vmatpush.msra.mxu0 %v1416
  %1539 = vmatpush.msra.mxu0 %v1415
  %1540 = vmatmul.f32.gmra.mxu0 %v1522
  %v1541 = vpop.f32.mrf.mxu0
  %v1542 = vadd.f32 %v1496, %v1541
  %1543 = vdwg.mxu0
  %v1545 = vsel %vm1422, %v1494, 0
  %1547 = vmatpush.msra.mxu0 0.0
  %1548 = vmatpush.msra.mxu0 0.0
  %1549 = vmatpush.msra.mxu0 0.0
  %1550 = vmatpush.msra.mxu0 0.0
  %1551 = vmatpush.msra.mxu0 0.0
  %1552 = vmatpush.msra.mxu0 0.0
  %1553 = vmatpush.msra.mxu0 0.0
  %1554 = vmatpush.msra.mxu0 0.0
  %1555 = vmatpush.msra.mxu0 0.0
  %1556 = vmatpush.msra.mxu0 0.0
  %1557 = vmatpush.msra.mxu0 0.0
  %1558 = vmatpush.msra.mxu0 0.0
  %1559 = vmatpush.msra.mxu0 0.0
  %1560 = vmatpush.msra.mxu0 0.0
  %1561 = vmatpush.msra.mxu0 %v1418
  %1562 = vmatpush.msra.mxu0 %v1417
  %1563 = vmatmul.f32.gmra.mxu0 %v1545
  %v1564 = vpop.f32.mrf.mxu0
  %v1565 = vadd.f32 %v1497, %v1564
  %1566 = vdwg.mxu0
  %v1567 = vmax.f32 %v1519, 0.0
  %v1568 = vmax.f32 %v1542, 0.0
  %v1569 = vmax.f32 %v1565, 0.0
  %v1570 = vadd.f32 %v1404, %v1567
  %v1571 = vadd.f32 %v1405, %v1568
  %v1572 = vadd.f32 %v1406, %v1569
  %v1573 = vld [vmem:[%s2 + $0x40] sm:$0xff]
  %v1574 = vld [vmem:[%s2 + $0x48] sm:$0xff]
  %v1575 = vld [vmem:[%s2 + $0xf0] sm:$0xff]
  %v1576 = vld [vmem:[%s2 + $0xf8] sm:$0xff]
  %v1577 = vld [vmem:[%s2 + $0x1a0] sm:$0xff]
  %v1578 = vld [vmem:[%s2 + $0x1a8] sm:$0xff]
  %v1579 = vld [vmem:[%s2 + $0x50] sm:$0xff]
  %v1580 = vld [vmem:[%s2 + $0x58] sm:$0xff]
  %v1581 = vld [vmem:[%s2 + $0x100] sm:$0xff]
  %v1582 = vld [vmem:[%s2 + $0x108] sm:$0xff]
  %v1583 = vld [vmem:[%s2 + $0x1b0] sm:$0xff]
  %v1584 = vld [vmem:[%s2 + $0x1b8] sm:$0xff]
  %v1585 = vperm.slane %v1314, 3
  %v1586 = vperm.slane %v1316, 3
  %v1587 = vperm.slane %v1318, 3
  %v1589 = vsel %vm1422, %v1570, 0
  %1591 = vmatpush.msra.mxu0 0.0
  %1592 = vmatpush.msra.mxu0 0.0
  %1593 = vmatpush.msra.mxu0 0.0
  %1594 = vmatpush.msra.mxu0 0.0
  %1595 = vmatpush.msra.mxu0 0.0
  %1596 = vmatpush.msra.mxu0 0.0
  %1597 = vmatpush.msra.mxu0 0.0
  %1598 = vmatpush.msra.mxu0 0.0
  %1599 = vmatpush.msra.mxu0 0.0
  %1600 = vmatpush.msra.mxu0 0.0
  %1601 = vmatpush.msra.mxu0 0.0
  %1602 = vmatpush.msra.mxu0 0.0
  %1603 = vmatpush.msra.mxu0 0.0
  %1604 = vmatpush.msra.mxu0 0.0
  %1605 = vmatpush.msra.mxu0 %v1574
  %1606 = vmatpush.msra.mxu0 %v1573
  %1607 = vmatmul.f32.gmra.mxu0 %v1589
  %v1608 = vpop.f32.mrf.mxu0
  %v1609 = vadd.f32 %v1585, %v1608
  %1610 = vdwg.mxu0
  %v1612 = vsel %vm1422, %v1571, 0
  %1614 = vmatpush.msra.mxu0 0.0
  %1615 = vmatpush.msra.mxu0 0.0
  %1616 = vmatpush.msra.mxu0 0.0
  %1617 = vmatpush.msra.mxu0 0.0
  %1618 = vmatpush.msra.mxu0 0.0
  %1619 = vmatpush.msra.mxu0 0.0
  %1620 = vmatpush.msra.mxu0 0.0
  %1621 = vmatpush.msra.mxu0 0.0
  %1622 = vmatpush.msra.mxu0 0.0
  %1623 = vmatpush.msra.mxu0 0.0
  %1624 = vmatpush.msra.mxu0 0.0
  %1625 = vmatpush.msra.mxu0 0.0
  %1626 = vmatpush.msra.mxu0 0.0
  %1627 = vmatpush.msra.mxu0 0.0
  %1628 = vmatpush.msra.mxu0 %v1576
  %1629 = vmatpush.msra.mxu0 %v1575
  %1630 = vmatmul.f32.gmra.mxu0 %v1612
  %v1631 = vpop.f32.mrf.mxu0
  %v1632 = vadd.f32 %v1586, %v1631
  %1633 = vdwg.mxu0
  %v1635 = vsel %vm1422, %v1572, 0
  %1637 = vmatpush.msra.mxu0 0.0
  %1638 = vmatpush.msra.mxu0 0.0
  %1639 = vmatpush.msra.mxu0 0.0
  %1640 = vmatpush.msra.mxu0 0.0
  %1641 = vmatpush.msra.mxu0 0.0
  %1642 = vmatpush.msra.mxu0 0.0
  %1643 = vmatpush.msra.mxu0 0.0
  %1644 = vmatpush.msra.mxu0 0.0
  %1645 = vmatpush.msra.mxu0 0.0
  %1646 = vmatpush.msra.mxu0 0.0
  %1647 = vmatpush.msra.mxu0 0.0
  %1648 = vmatpush.msra.mxu0 0.0
  %1649 = vmatpush.msra.mxu0 0.0
  %1650 = vmatpush.msra.mxu0 0.0
  %1651 = vmatpush.msra.mxu0 %v1578
  %1652 = vmatpush.msra.mxu0 %v1577
  %1653 = vmatmul.f32.gmra.mxu0 %v1635
  %v1654 = vpop.f32.mrf.mxu0
  %v1655 = vadd.f32 %v1587, %v1654
  %1656 = vdwg.mxu0
  %v1657 = vmax.f32 %v1609, 0.0
  %v1658 = vmax.f32 %v1632, 0.0
  %v1659 = vmax.f32 %v1655, 0.0
  %v1660 = vperm.slane %v1314, 4
  %v1661 = vperm.slane %v1316, 4
  %v1662 = vperm.slane %v1318, 4
  %v1664 = vsel %vm1422, %v1657, 0
  %1666 = vmatpush.msra.mxu0 0.0
  %1667 = vmatpush.msra.mxu0 0.0
  %1668 = vmatpush.msra.mxu0 0.0
  %1669 = vmatpush.msra.mxu0 0.0
  %1670 = vmatpush.msra.mxu0 0.0
  %1671 = vmatpush.msra.mxu0 0.0
  %1672 = vmatpush.msra.mxu0 0.0
  %1673 = vmatpush.msra.mxu0 0.0
  %1674 = vmatpush.msra.mxu0 0.0
  %1675 = vmatpush.msra.mxu0 0.0
  %1676 = vmatpush.msra.mxu0 0.0
  %1677 = vmatpush.msra.mxu0 0.0
  %1678 = vmatpush.msra.mxu0 0.0
  %1679 = vmatpush.msra.mxu0 0.0
  %1680 = vmatpush.msra.mxu0 %v1580
  %1681 = vmatpush.msra.mxu0 %v1579
  %1682 = vmatmul.f32.gmra.mxu0 %v1664
  %v1683 = vpop.f32.mrf.mxu0
  %v1684 = vadd.f32 %v1660, %v1683
  %1685 = vdwg.mxu0
  %v1687 = vsel %vm1422, %v1658, 0
  %1689 = vmatpush.msra.mxu0 0.0
  %1690 = vmatpush.msra.mxu0 0.0
  %1691 = vmatpush.msra.mxu0 0.0
  %1692 = vmatpush.msra.mxu0 0.0
  %1693 = vmatpush.msra.mxu0 0.0
  %1694 = vmatpush.msra.mxu0 0.0
  %1695 = vmatpush.msra.mxu0 0.0
  %1696 = vmatpush.msra.mxu0 0.0
  %1697 = vmatpush.msra.mxu0 0.0
  %1698 = vmatpush.msra.mxu0 0.0
  %1699 = vmatpush.msra.mxu0 0.0
  %1700 = vmatpush.msra.mxu0 0.0
  %1701 = vmatpush.msra.mxu0 0.0
  %1702 = vmatpush.msra.mxu0 0.0
  %1703 = vmatpush.msra.mxu0 %v1582
  %1704 = vmatpush.msra.mxu0 %v1581
  %1705 = vmatmul.f32.gmra.mxu0 %v1687
  %v1706 = vpop.f32.mrf.mxu0
  %v1707 = vadd.f32 %v1661, %v1706
  %1708 = vdwg.mxu0
  %v1710 = vsel %vm1422, %v1659, 0
  %1712 = vmatpush.msra.mxu0 0.0
  %1713 = vmatpush.msra.mxu0 0.0
  %1714 = vmatpush.msra.mxu0 0.0
  %1715 = vmatpush.msra.mxu0 0.0
  %1716 = vmatpush.msra.mxu0 0.0
  %1717 = vmatpush.msra.mxu0 0.0
  %1718 = vmatpush.msra.mxu0 0.0
  %1719 = vmatpush.msra.mxu0 0.0
  %1720 = vmatpush.msra.mxu0 0.0
  %1721 = vmatpush.msra.mxu0 0.0
  %1722 = vmatpush.msra.mxu0 0.0
  %1723 = vmatpush.msra.mxu0 0.0
  %1724 = vmatpush.msra.mxu0 0.0
  %1725 = vmatpush.msra.mxu0 0.0
  %1726 = vmatpush.msra.mxu0 %v1584
  %1727 = vmatpush.msra.mxu0 %v1583
  %1728 = vmatmul.f32.gmra.mxu0 %v1710
  %v1729 = vpop.f32.mrf.mxu0
  %v1730 = vadd.f32 %v1662, %v1729
  %1731 = vdwg.mxu0
  %v1732 = vmax.f32 %v1684, 0.0
  %v1733 = vmax.f32 %v1707, 0.0
  %v1734 = vmax.f32 %v1730, 0.0
  %v1735 = vadd.f32 %v1570, %v1732
  %v1736 = vadd.f32 %v1571, %v1733
  %v1737 = vadd.f32 %v1572, %v1734
  %v1738 = vld [vmem:[%s2 + $0x60] sm:$0xff]
  %v1739 = vld [vmem:[%s2 + $0x68] sm:$0xff]
  %v1740 = vld [vmem:[%s2 + $0x110] sm:$0xff]
  %v1741 = vld [vmem:[%s2 + $0x118] sm:$0xff]
  %v1742 = vld [vmem:[%s2 + $0x1c0] sm:$0xff]
  %v1743 = vld [vmem:[%s2 + $0x1c8] sm:$0xff]
  %v1744 = vld [vmem:[%s2 + $0x70] sm:$0xff]
  %v1745 = vld [vmem:[%s2 + $0x78] sm:$0xff]
  %v1746 = vld [vmem:[%s2 + $0x120] sm:$0xff]
  %v1747 = vld [vmem:[%s2 + $0x128] sm:$0xff]
  %v1748 = vld [vmem:[%s2 + $0x1d0] sm:$0xff]
  %v1749 = vld [vmem:[%s2 + $0x1d8] sm:$0xff]
  %v1750 = vperm.slane %v1314, 5
  %v1751 = vperm.slane %v1316, 5
  %v1752 = vperm.slane %v1318, 5
  %v1754 = vsel %vm1422, %v1735, 0
  %1756 = vmatpush.msra.mxu0 0.0
  %1757 = vmatpush.msra.mxu0 0.0
  %1758 = vmatpush.msra.mxu0 0.0
  %1759 = vmatpush.msra.mxu0 0.0
  %1760 = vmatpush.msra.mxu0 0.0
  %1761 = vmatpush.msra.mxu0 0.0
  %1762 = vmatpush.msra.mxu0 0.0
  %1763 = vmatpush.msra.mxu0 0.0
  %1764 = vmatpush.msra.mxu0 0.0
  %1765 = vmatpush.msra.mxu0 0.0
  %1766 = vmatpush.msra.mxu0 0.0
  %1767 = vmatpush.msra.mxu0 0.0
  %1768 = vmatpush.msra.mxu0 0.0
  %1769 = vmatpush.msra.mxu0 0.0
  %1770 = vmatpush.msra.mxu0 %v1739
  %1771 = vmatpush.msra.mxu0 %v1738
  %1772 = vmatmul.f32.gmra.mxu0 %v1754
  %v1773 = vpop.f32.mrf.mxu0
  %v1774 = vadd.f32 %v1750, %v1773
  %1775 = vdwg.mxu0
  %v1777 = vsel %vm1422, %v1736, 0
  %1779 = vmatpush.msra.mxu0 0.0
  %1780 = vmatpush.msra.mxu0 0.0
  %1781 = vmatpush.msra.mxu0 0.0
  %1782 = vmatpush.msra.mxu0 0.0
  %1783 = vmatpush.msra.mxu0 0.0
  %1784 = vmatpush.msra.mxu0 0.0
  %1785 = vmatpush.msra.mxu0 0.0
  %1786 = vmatpush.msra.mxu0 0.0
  %1787 = vmatpush.msra.mxu0 0.0
  %1788 = vmatpush.msra.mxu0 0.0
  %1789 = vmatpush.msra.mxu0 0.0
  %1790 = vmatpush.msra.mxu0 0.0
  %1791 = vmatpush.msra.mxu0 0.0
  %1792 = vmatpush.msra.mxu0 0.0
  %1793 = vmatpush.msra.mxu0 %v1741
  %1794 = vmatpush.msra.mxu0 %v1740
  %1795 = vmatmul.f32.gmra.mxu0 %v1777
  %v1796 = vpop.f32.mrf.mxu0
  %v1797 = vadd.f32 %v1751, %v1796
  %1798 = vdwg.mxu0
  %v1800 = vsel %vm1422, %v1737, 0
  %1802 = vmatpush.msra.mxu0 0.0
  %1803 = vmatpush.msra.mxu0 0.0
  %1804 = vmatpush.msra.mxu0 0.0
  %1805 = vmatpush.msra.mxu0 0.0
  %1806 = vmatpush.msra.mxu0 0.0
  %1807 = vmatpush.msra.mxu0 0.0
  %1808 = vmatpush.msra.mxu0 0.0
  %1809 = vmatpush.msra.mxu0 0.0
  %1810 = vmatpush.msra.mxu0 0.0
  %1811 = vmatpush.msra.mxu0 0.0
  %1812 = vmatpush.msra.mxu0 0.0
  %1813 = vmatpush.msra.mxu0 0.0
  %1814 = vmatpush.msra.mxu0 0.0
  %1815 = vmatpush.msra.mxu0 0.0
  %1816 = vmatpush.msra.mxu0 %v1743
  %1817 = vmatpush.msra.mxu0 %v1742
  %1818 = vmatmul.f32.gmra.mxu0 %v1800
  %v1819 = vpop.f32.mrf.mxu0
  %v1820 = vadd.f32 %v1752, %v1819
  %1821 = vdwg.mxu0
  %v1822 = vmax.f32 %v1774, 0.0
  %v1823 = vmax.f32 %v1797, 0.0
  %v1824 = vmax.f32 %v1820, 0.0
  %v1825 = vperm.slane %v1314, 6
  %v1826 = vperm.slane %v1316, 6
  %v1827 = vperm.slane %v1318, 6
  %v1829 = vsel %vm1422, %v1822, 0
  %1831 = vmatpush.msra.mxu0 0.0
  %1832 = vmatpush.msra.mxu0 0.0
  %1833 = vmatpush.msra.mxu0 0.0
  %1834 = vmatpush.msra.mxu0 0.0
  %1835 = vmatpush.msra.mxu0 0.0
  %1836 = vmatpush.msra.mxu0 0.0
  %1837 = vmatpush.msra.mxu0 0.0
  %1838 = vmatpush.msra.mxu0 0.0
  %1839 = vmatpush.msra.mxu0 0.0
  %1840 = vmatpush.msra.mxu0 0.0
  %1841 = vmatpush.msra.mxu0 0.0
  %1842 = vmatpush.msra.mxu0 0.0
  %1843 = vmatpush.msra.mxu0 0.0
  %1844 = vmatpush.msra.mxu0 0.0
  %1845 = vmatpush.msra.mxu0 %v1745
  %1846 = vmatpush.msra.mxu0 %v1744
  %1847 = vmatmul.f32.gmra.mxu0 %v1829
  %v1848 = vpop.f32.mrf.mxu0
  %v1849 = vadd.f32 %v1825, %v1848
  %1850 = vdwg.mxu0
  %v1852 = vsel %vm1422, %v1823, 0
  %1854 = vmatpush.msra.mxu0 0.0
  %1855 = vmatpush.msra.mxu0 0.0
  %1856 = vmatpush.msra.mxu0 0.0
  %1857 = vmatpush.msra.mxu0 0.0
  %1858 = vmatpush.msra.mxu0 0.0
  %1859 = vmatpush.msra.mxu0 0.0
  %1860 = vmatpush.msra.mxu0 0.0
  %1861 = vmatpush.msra.mxu0 0.0
  %1862 = vmatpush.msra.mxu0 0.0
  %1863 = vmatpush.msra.mxu0 0.0
  %1864 = vmatpush.msra.mxu0 0.0
  %1865 = vmatpush.msra.mxu0 0.0
  %1866 = vmatpush.msra.mxu0 0.0
  %1867 = vmatpush.msra.mxu0 0.0
  %1868 = vmatpush.msra.mxu0 %v1747
  %1869 = vmatpush.msra.mxu0 %v1746
  %1870 = vmatmul.f32.gmra.mxu0 %v1852
  %v1871 = vpop.f32.mrf.mxu0
  %v1872 = vadd.f32 %v1826, %v1871
  %1873 = vdwg.mxu0
  %v1875 = vsel %vm1422, %v1824, 0
  %1877 = vmatpush.msra.mxu0 0.0
  %1878 = vmatpush.msra.mxu0 0.0
  %1879 = vmatpush.msra.mxu0 0.0
  %1880 = vmatpush.msra.mxu0 0.0
  %1881 = vmatpush.msra.mxu0 0.0
  %1882 = vmatpush.msra.mxu0 0.0
  %1883 = vmatpush.msra.mxu0 0.0
  %1884 = vmatpush.msra.mxu0 0.0
  %1885 = vmatpush.msra.mxu0 0.0
  %1886 = vmatpush.msra.mxu0 0.0
  %1887 = vmatpush.msra.mxu0 0.0
  %1888 = vmatpush.msra.mxu0 0.0
  %1889 = vmatpush.msra.mxu0 0.0
  %1890 = vmatpush.msra.mxu0 0.0
  %1891 = vmatpush.msra.mxu0 %v1749
  %1892 = vmatpush.msra.mxu0 %v1748
  %1893 = vmatmul.f32.gmra.mxu0 %v1875
  %v1894 = vpop.f32.mrf.mxu0
  %v1895 = vadd.f32 %v1827, %v1894
  %1896 = vdwg.mxu0
  %v1897 = vmax.f32 %v1849, 0.0
  %v1898 = vmax.f32 %v1872, 0.0
  %v1899 = vmax.f32 %v1895, 0.0
  %v1900 = vadd.f32 %v1735, %v1897
  %v1901 = vadd.f32 %v1736, %v1898
  %v1902 = vadd.f32 %v1737, %v1899
  %v1903 = vld [vmem:[%s2 + $0x80] sm:$0xff]
  %v1904 = vld [vmem:[%s2 + $0x88] sm:$0xff]
  %v1905 = vld [vmem:[%s2 + $0x130] sm:$0xff]
  %v1906 = vld [vmem:[%s2 + $0x138] sm:$0xff]
  %v1907 = vld [vmem:[%s2 + $0x1e0] sm:$0xff]
  %v1908 = vld [vmem:[%s2 + $0x1e8] sm:$0xff]
  %v1909 = vperm.slane %v1314, 7
  %v1910 = vperm.slane %v1316, 7
  %v1911 = vperm.slane %v1318, 7
  %v1913 = vsel %vm1422, %v1900, 0
  %1915 = vmatpush.msra.mxu0 0.0
  %1916 = vmatpush.msra.mxu0 0.0
  %1917 = vmatpush.msra.mxu0 0.0
  %1918 = vmatpush.msra.mxu0 0.0
  %1919 = vmatpush.msra.mxu0 0.0
  %1920 = vmatpush.msra.mxu0 0.0
  %1921 = vmatpush.msra.mxu0 0.0
  %1922 = vmatpush.msra.mxu0 0.0
  %1923 = vmatpush.msra.mxu0 0.0
  %1924 = vmatpush.msra.mxu0 0.0
  %1925 = vmatpush.msra.mxu0 0.0
  %1926 = vmatpush.msra.mxu0 0.0
  %1927 = vmatpush.msra.mxu0 0.0
  %1928 = vmatpush.msra.mxu0 0.0
  %1929 = vmatpush.msra.mxu0 %v1904
  %1930 = vmatpush.msra.mxu0 %v1903
  %1931 = vmatmul.f32.gmra.mxu0 %v1913
  %v1932 = vpop.f32.mrf.mxu0
  %v1933 = vadd.f32 %v1909, %v1932
  %1934 = vdwg.mxu0
  %v1936 = vsel %vm1422, %v1901, 0
  %1938 = vmatpush.msra.mxu0 0.0
  %1939 = vmatpush.msra.mxu0 0.0
  %1940 = vmatpush.msra.mxu0 0.0
  %1941 = vmatpush.msra.mxu0 0.0
  %1942 = vmatpush.msra.mxu0 0.0
  %1943 = vmatpush.msra.mxu0 0.0
  %1944 = vmatpush.msra.mxu0 0.0
  %1945 = vmatpush.msra.mxu0 0.0
  %1946 = vmatpush.msra.mxu0 0.0
  %1947 = vmatpush.msra.mxu0 0.0
  %1948 = vmatpush.msra.mxu0 0.0
  %1949 = vmatpush.msra.mxu0 0.0
  %1950 = vmatpush.msra.mxu0 0.0
  %1951 = vmatpush.msra.mxu0 0.0
  %1952 = vmatpush.msra.mxu0 %v1906
  %1953 = vmatpush.msra.mxu0 %v1905
  %1954 = vmatmul.f32.gmra.mxu0 %v1936
  %v1955 = vpop.f32.mrf.mxu0
  %v1956 = vadd.f32 %v1910, %v1955
  %1957 = vdwg.mxu0
  %v1959 = vsel %vm1422, %v1902, 0
  %1961 = vmatpush.msra.mxu0 0.0
  %1962 = vmatpush.msra.mxu0 0.0
  %1963 = vmatpush.msra.mxu0 0.0
  %1964 = vmatpush.msra.mxu0 0.0
  %1965 = vmatpush.msra.mxu0 0.0
  %1966 = vmatpush.msra.mxu0 0.0
  %1967 = vmatpush.msra.mxu0 0.0
  %1968 = vmatpush.msra.mxu0 0.0
  %1969 = vmatpush.msra.mxu0 0.0
  %1970 = vmatpush.msra.mxu0 0.0
  %1971 = vmatpush.msra.mxu0 0.0
  %1972 = vmatpush.msra.mxu0 0.0
  %1973 = vmatpush.msra.mxu0 0.0
  %1974 = vmatpush.msra.mxu0 0.0
  %1975 = vmatpush.msra.mxu0 %v1908
  %1976 = vmatpush.msra.mxu0 %v1907
  %1977 = vmatmul.f32.gmra.mxu0 %v1959
  %v1978 = vpop.f32.mrf.mxu0
  %v1979 = vadd.f32 %v1911, %v1978
  %1980 = vdwg.mxu0
  %v1981 = vmax.f32 %v1933, 0.0
  %v1982 = vmax.f32 %v1956, 0.0
  %v1983 = vmax.f32 %v1979, 0.0
  %v1984 = vld [vmem:[%s2 + $0x90] sm:$0xff]
  %v1985 = vld [vmem:[%s2 + $0x98] sm:$0xff]
  %v1986 = vld [vmem:[%s2 + $0x140] sm:$0xff]
  %v1987 = vld [vmem:[%s2 + $0x148] sm:$0xff]
  %v1988 = vld [vmem:[%s2 + $0x1f0] sm:$0xff]
  %v1989 = vld [vmem:[%s2 + $0x1f8] sm:$0xff]
  %v1990 = vperm.slane %v1315, 0
  %v1991 = vperm.slane %v1317, 0
  %v1992 = vperm.slane %v1319, 0
  %v1994 = vsel %vm1422, %v1981, 0
  %1996 = vmatpush.msra.mxu0 0.0
  %1997 = vmatpush.msra.mxu0 0.0
  %1998 = vmatpush.msra.mxu0 0.0
  %1999 = vmatpush.msra.mxu0 0.0
  %2000 = vmatpush.msra.mxu0 0.0
  %2001 = vmatpush.msra.mxu0 0.0
  %2002 = vmatpush.msra.mxu0 0.0
  %2003 = vmatpush.msra.mxu0 0.0
  %2004 = vmatpush.msra.mxu0 0.0
  %2005 = vmatpush.msra.mxu0 0.0
  %2006 = vmatpush.msra.mxu0 0.0
  %2007 = vmatpush.msra.mxu0 0.0
  %2008 = vmatpush.msra.mxu0 0.0
  %2009 = vmatpush.msra.mxu0 0.0
  %2010 = vmatpush.msra.mxu0 %v1985
  %2011 = vmatpush.msra.mxu0 %v1984
  %2012 = vmatmul.f32.gmra.mxu0 %v1994
  %v2013 = vpop.f32.mrf.mxu0
  %v2014 = vadd.f32 %v1990, %v2013
  %2015 = vdwg.mxu0
  %v2017 = vsel %vm1422, %v1982, 0
  %2019 = vmatpush.msra.mxu0 0.0
  %2020 = vmatpush.msra.mxu0 0.0
  %2021 = vmatpush.msra.mxu0 0.0
  %2022 = vmatpush.msra.mxu0 0.0
  %2023 = vmatpush.msra.mxu0 0.0
  %2024 = vmatpush.msra.mxu0 0.0
  %2025 = vmatpush.msra.mxu0 0.0
  %2026 = vmatpush.msra.mxu0 0.0
  %2027 = vmatpush.msra.mxu0 0.0
  %2028 = vmatpush.msra.mxu0 0.0
  %2029 = vmatpush.msra.mxu0 0.0
  %2030 = vmatpush.msra.mxu0 0.0
  %2031 = vmatpush.msra.mxu0 0.0
  %2032 = vmatpush.msra.mxu0 0.0
  %2033 = vmatpush.msra.mxu0 %v1987
  %2034 = vmatpush.msra.mxu0 %v1986
  %2035 = vmatmul.f32.gmra.mxu0 %v2017
  %v2036 = vpop.f32.mrf.mxu0
  %v2037 = vadd.f32 %v1991, %v2036
  %2038 = vdwg.mxu0
  %v2040 = vsel %vm1422, %v1983, 0
  %2042 = vmatpush.msra.mxu0 0.0
  %2043 = vmatpush.msra.mxu0 0.0
  %2044 = vmatpush.msra.mxu0 0.0
  %2045 = vmatpush.msra.mxu0 0.0
  %2046 = vmatpush.msra.mxu0 0.0
  %2047 = vmatpush.msra.mxu0 0.0
  %2048 = vmatpush.msra.mxu0 0.0
  %2049 = vmatpush.msra.mxu0 0.0
  %2050 = vmatpush.msra.mxu0 0.0
  %2051 = vmatpush.msra.mxu0 0.0
  %2052 = vmatpush.msra.mxu0 0.0
  %2053 = vmatpush.msra.mxu0 0.0
  %2054 = vmatpush.msra.mxu0 0.0
  %2055 = vmatpush.msra.mxu0 0.0
  %2056 = vmatpush.msra.mxu0 %v1989
  %2057 = vmatpush.msra.mxu0 %v1988
  %2058 = vmatmul.f32.gmra.mxu0 %v2040
  %v2059 = vpop.f32.mrf.mxu0
  %v2060 = vadd.f32 %v1992, %v2059
  %2061 = vdwg.mxu0
  %v2062 = vtanh.pop %v2014
  %v2063 = vsub.f32 0.0, %v2037
  %v2064 = vmul.f32 %v2063, 1.442695
  %v2065 = vpow.pop %v2064
  %v2066 = vadd.f32 %v2065, 1.0
  %v2067 = vrcp.pop %v2066
  %v2068 = vmul.f32 %v2066, %v2067
  %v2069 = vsub.f32 1.0, %v2068
  %v2070 = vmul.f32 %v2067, %v2069
  %v2071 = vadd.f32 %v2067, %v2070
  %vm2072 = vweird.f32 %v2066
  %vm2073 = vweird.f32 %v2067
  %vm2074 = vmor %vm2072, %vm2073
  %v2075 = vsel %vm2074, %v2067, %v2071
  %v2076 = vand.u32 2147483647, %v2066
  %vm2077 = vcmp.eq.f32.partialorder %v2076, 8.507059e+37
  %v2078 = vand.u32 %v2066, 2147483648
  %v2079 = vor.u32 1.1754944e-38, %v2078
  %v2080 = vsel %vm2077, %v2079, %v2075
  %v2081 = vmul.f32 100.0, %v2080
  %vm2082 = vcmask 7168
  %2083 = vst.msk [vmem:[%s4] sm:$0xff] %vm2082, %v2062
  %2084 = vst.msk [vmem:[%s4 + $0x8] sm:$0xff] %vm2082, %v2081
  %2085 = vst.msk [vmem:[%s4 + $0x10] sm:$0xff] %vm2082, %v2060
  // Predicated region
  $region14: #{chess_heads_forward.1} parent=0 // pred_check
    _
  $region15: #{chess_heads_forward.1} parent=0 // pred_check_branch
    %2087 = sbr.rel (0) target = $region17
  $region16: #{chess_heads_forward.1} parent=0 // pred_region
    _
  $region17: #{chess_heads_forward.1} parent=0 // pred_fallthru
    _
  // Predicated region
  $region18: #{chess_heads_forward.1} parent=0 // pred_check
    _
  $region19: #{chess_heads_forward.1} parent=0 // pred_check_branch
    %2089 = sbr.rel (0) target = $region21
  $region20: #{chess_heads_forward.1} parent=0 // pred_region
    _
  $region21: #{chess_heads_forward.1} parent=0 // pred_fallthru
    _
  // Predicated region
  $region22: #{chess_heads_forward.1} parent=0 // pred_check
    _
  $region23: #{chess_heads_forward.1} parent=0 // pred_check_branch
    %2091 = sbr.rel (0) target = $region25
  $region24: #{chess_heads_forward.1} parent=0 // pred_region
    _
  $region25: #{chess_heads_forward.1} parent=0 // pred_fallthru
    _
  // Predicated region
  $region26: #{chess_heads_forward.1} parent=0 // pred_check
    _
  $region27: #{chess_heads_forward.1} parent=0 // pred_check_branch
    %2093 = sbr.rel (0) target = $region29
  $region28: #{chess_heads_forward.1} parent=0 // pred_region
    _
  $region29: #{chess_heads_forward.1} parent=0 // pred_fallthru
    _

</llo_original>
